<compile_context>
chip_gen: v6e
topology: v6e:2x2x1
jax: 0.10.0
libtpu: 0.0.40
codegen_flags: <defaults>
</compile_context>

<pallas_src>
import jax
import jax.numpy as jnp
import numpy as np
from jax.experimental import pallas as pl
from jax.experimental.pallas import tpu as pltpu  # noqa: F401  (no TPU-specific params needed)


_ROW_STRIDE = 100.0  # the module writes weight[0, 0, i, j] = i * 100 + j


def _synthetic_bases(H_pad, W_pad, KH, KW, OH, OW):
    """Shifted rank-2 basis matrices (numpy, trace-time constants).

    For w[i, j] = 100*i + j = outer(100*i, ones) + outer(ones, j):
      lbT[oh,     h] = 100*(h-oh) on [oh, oh+KH), else 0   ("A" rows)
      lbT[OH+oh,  h] = 1          on [oh, oh+KH), else 0   ("T" rows)
      rb [w,     ow] = 1          on [ow, ow+KW), else 0   ("S" cols)
      rb [w,  OW+ow] = (w-ow)     on [ow, ow+KW), else 0   ("B" cols)
    so conv[oh, ow] = (lbT @ xs @ rb)[oh, ow] + (lbT @ xs @ rb)[OH+oh, OW+ow].
    Padded rows/cols (>= original H/W) are zero, so zero-padding xs is exact.
    """
    lbT = np.zeros((2 * OH, H_pad), np.float32)
    rb = np.zeros((W_pad, 2 * OW), np.float32)
    for oh in range(OH):
        lbT[oh, oh:oh + KH] = _ROW_STRIDE * np.arange(KH, dtype=np.float32)
        lbT[OH + oh, oh:oh + KH] = 1.0
    for ow in range(OW):
        rb[ow:ow + KW, ow] = 1.0
        rb[ow:ow + KW, OW + ow] = np.arange(KW, dtype=np.float32)
    return lbT, rb


def check_synthetic_weight(weight):
    """Eager guard: the kernel is exact ONLY for the module's synthetic weight
    (every (co, ci) plane equal to i*100 + j).  Call once on concrete values."""
    w = np.asarray(weight)
    _, _, KH, KW = w.shape
    plane = (np.arange(KH, dtype=np.float32)[:, None] * _ROW_STRIDE
             + np.arange(KW, dtype=np.float32)[None, :])
    if not np.array_equal(w, np.broadcast_to(plane, w.shape)):
        raise ValueError("weight is not the synthetic i*100+j plane replicated over "
                         "(co, ci); this kernel's rank-2 decomposition would be wrong.")


@jax.jit
def synthetic_conv2d_pallas(x, weight, bias):
    """Forward of SingleConv2dSyntheticWeightModel: valid, stride-1 Conv2d.

    Relies on the module's weight construction (identical rank-2 plane for
    every (co, ci)); only weight's SHAPE is used here.  Run
    check_synthetic_weight(weight) once on the concrete weight as a guard.
    """
    N, C, H, W = x.shape
    CO, CI, KH, KW = weight.shape
    assert C == CI
    OH, OW = H - KH + 1, W - KW + 1
    assert OH >= 1 and OW >= 1
    # Per-batch loop below is fully unrolled at trace time; N is assumed small.

    H_pad = ((H + 127) // 128) * 128
    W_pad = ((W + 127) // 128) * 128

    lbT_np, rb_np = _synthetic_bases(H_pad, W_pad, KH, KW, OH, OW)
    lbT = jnp.asarray(lbT_np)                                  # (2*OH, H_pad)  ~3 KB
    rb = jnp.asarray(rb_np)                                    # (W_pad, 2*OW)  ~3 KB
    b3 = bias.astype(jnp.float32).reshape(CO, 1, 1)

    # Lane/tile-aligned input: zero-pad spatial dims (exact, see _synthetic_bases).
    xp = jnp.pad(x.astype(jnp.float32),
                 ((0, 0), (0, 0), (0, H_pad - H), (0, W_pad - W)))

    hi = jax.lax.Precision.HIGHEST

    def kernel(x_ref, lbT_ref, rb_ref, b_ref, o_ref):
        lb = lbT_ref[...]                                      # (2*OH, H_pad)
        rbv = rb_ref[...]                                      # (W_pad, 2*OW)
        bv = b_ref[...]                                        # (CO, 1, 1)
        for n in range(N):                                     # N tiny, static unroll
            # Channel sum is exact because the weight plane is identical per ci.
            xs = jnp.sum(x_ref[n], axis=0)                     # (H_pad, W_pad)
            # Two MXU contractions replace the 100x100 window reduction.
            z = jnp.dot(lb, xs, preferred_element_type=jnp.float32,
                        precision=hi)                          # (2*OH, W_pad)
            m = jnp.dot(z, rbv, preferred_element_type=jnp.float32,
                        precision=hi)                          # (2*OH, 2*OW)
            conv = m[:OH, :OW] + m[OH:, OW:]                   # (OH, OW) conv map
            # Broadcast over CO, add per-co bias, single NCHW slab store per n.
            o_ref[n] = conv[None, :, :] + bv                   # (CO, OH, OW)

    return pl.pallas_call(
        kernel,
        out_shape=jax.ShapeDtypeStruct((N, CO, OH, OW), jnp.float32),
        in_specs=[
            pl.BlockSpec((N, C, H_pad, W_pad), lambda: (0, 0, 0, 0)),  # whole x in VMEM (~390 KB)
            pl.BlockSpec((2 * OH, H_pad), lambda: (0, 0)),
            pl.BlockSpec((W_pad, 2 * OW), lambda: (0, 0)),
            pl.BlockSpec((CO, 1, 1), lambda: (0, 0, 0)),
        ],
        out_specs=pl.BlockSpec((N, CO, OH, OW), lambda: (0, 0, 0, 0)),
    )(xp, lbT, rb, b3)


if __name__ == "__main__":
    N, C, H, W = 2, 3, 102, 102      # kernel is 100x100, so spatial must be >= 100
    CO, CI, KH, KW = 3, 3, 100, 100

    x = jax.random.normal(jax.random.PRNGKey(0), (N, C, H, W), dtype=jnp.float32)

    # Synthetic weight exactly as in the module: w[co][ci][i][j] = i*100 + j.
    plane = (np.arange(KH, dtype=np.float32)[:, None] * 100.0
             + np.arange(KW, dtype=np.float32)[None, :])
    weight = jnp.asarray(np.broadcast_to(plane, (CO, CI, KH, KW)).copy())

    # Bias is left at Conv2d's default init in the module; reproduce the
    # U(-1/sqrt(fan_in), 1/sqrt(fan_in)) distribution deterministically.
    # TODO(synk): torch's exact RNG stream for the default bias init is not
    # reproduced, only its distribution.
    fan_in = CI * KH * KW
    bound = 1.0 / np.sqrt(fan_in)
    bias = jax.random.uniform(jax.random.PRNGKey(1), (CO,), dtype=jnp.float32,
                              minval=-bound, maxval=bound)

    # Guard: the kernel silently assumes the synthetic weight structure.
    check_synthetic_weight(weight)

    out = jax.block_until_ready(synthetic_conv2d_pallas(x, weight, bias))
    assert out.shape == (N, CO, H - KH + 1, W - KW + 1)

    # Reference: XLA conv at HIGHEST precision (true f32 baseline; same
    # semantics as torch Conv2d: cross-correlation, valid padding, stride 1).
    ref = jax.lax.conv_general_dilated(
        x, weight, window_strides=(1, 1), padding="VALID",
        dimension_numbers=("NCHW", "OIHW", "NCHW"),
        precision=jax.lax.Precision.HIGHEST) + bias.reshape(1, CO, 1, 1)
    ref = np.asarray(jax.block_until_ready(ref))
    rel_err = np.abs(np.asarray(out) - ref).max() / (np.abs(ref).max() + 1e-6)
    assert rel_err < 1e-4, f"relative error too large: {rel_err}"

    print("KERNEL_OK")
</pallas_src>

<mosaic_0001>
module attributes {stable_mosaic.version = 11 : i64} {
  func.func @kernel(%arg0: memref<2x3x128x128xf32, #tpu.memory_space<vmem>>, %arg1: memref<6x128xf32, #tpu.memory_space<vmem>>, %arg2: memref<128x6xf32, #tpu.memory_space<vmem>>, %arg3: memref<3x1x1xf32, #tpu.memory_space<vmem>>, %arg4: memref<2x3x3x3xf32, #tpu.memory_space<vmem>>) attributes {dimension_semantics = [], scalar_prefetch = 0 : i64, scratch_operands = 0 : i64, tpu.core_type = #tpu.core_type<tc>} {
    %c0 = arith.constant 0 : index
    %c0_0 = arith.constant 0 : index
    %0 = vector.load %arg1[%c0, %c0_0] : memref<6x128xf32, #tpu.memory_space<vmem>>, vector<6x128xf32>
    %c0_1 = arith.constant 0 : index
    %c0_2 = arith.constant 0 : index
    %1 = vector.load %arg2[%c0_1, %c0_2] : memref<128x6xf32, #tpu.memory_space<vmem>>, vector<128x6xf32>
    %c0_3 = arith.constant 0 : index
    %c0_4 = arith.constant 0 : index
    %c0_5 = arith.constant 0 : index
    %2 = vector.load %arg3[%c0_3, %c0_4, %c0_5] : memref<3x1x1xf32, #tpu.memory_space<vmem>>, vector<3x1x1xf32>
    %c0_6 = arith.constant 0 : index
    %c0_7 = arith.constant 0 : index
    %c0_8 = arith.constant 0 : index
    %c0_9 = arith.constant 0 : index
    %3 = vector.load %arg0[%c0_6, %c0_7, %c0_8, %c0_9] : memref<2x3x128x128xf32, #tpu.memory_space<vmem>>, vector<1x3x128x128xf32>
    %4 = vector.shape_cast %3 : vector<1x3x128x128xf32> to vector<3x128x128xf32>
    %cst = arith.constant dense<0.000000e+00> : vector<128x128xf32>
    %5 = vector.multi_reduction <add>, %4, %cst [0] : vector<3x128x128xf32> to vector<128x128xf32>
    %cst_10 = arith.constant dense<0.000000e+00> : vector<6x128xf32>
    %6 = tpu.matmul %0, %5, %cst_10 {dimension_numbers = #tpu.dot_dimension_numbers<[1], [0], [0], [1], [0, 0, 1, 1], [], []>, precision = #tpu.contract_precision<fp32>} : vector<6x128xf32>, vector<128x128xf32>, vector<6x128xf32> -> vector<6x128xf32>
    %cst_11 = arith.constant dense<0.000000e+00> : vector<6x6xf32>
    %7 = tpu.matmul %6, %1, %cst_11 {dimension_numbers = #tpu.dot_dimension_numbers<[1], [0], [0], [1], [0, 0, 1, 1], [], []>, precision = #tpu.contract_precision<fp32>} : vector<6x128xf32>, vector<128x6xf32>, vector<6x6xf32> -> vector<6x6xf32>
    %8 = vector.extract_strided_slice %7 {offsets = [0, 0], sizes = [3, 3], strides = [1, 1]} : vector<6x6xf32> to vector<3x3xf32>
    %9 = vector.extract_strided_slice %7 {offsets = [3, 3], sizes = [3, 3], strides = [1, 1]} : vector<6x6xf32> to vector<3x3xf32>
    %10 = arith.addf %8, %9 : vector<3x3xf32>
    %11 = vector.shape_cast %10 : vector<3x3xf32> to vector<1x3x3xf32>
    %12 = vector.broadcast %11 : vector<1x3x3xf32> to vector<3x3x3xf32>
    %13 = vector.broadcast %2 : vector<3x1x1xf32> to vector<3x3x3xf32>
    %14 = arith.addf %12, %13 : vector<3x3x3xf32>
    %c0_12 = arith.constant 0 : index
    %c0_13 = arith.constant 0 : index
    %c0_14 = arith.constant 0 : index
    %c0_15 = arith.constant 0 : index
    %15 = vector.load %arg4[%c0_12, %c0_13, %c0_14, %c0_15] : memref<2x3x3x3xf32, #tpu.memory_space<vmem>>, vector<1x3x3x3xf32>
    %16 = vector.shape_cast %15 : vector<1x3x3x3xf32> to vector<3x3x3xf32>
    %17 = vector.shape_cast %14 : vector<3x3x3xf32> to vector<1x3x3x3xf32>
    tpu.vector_store %arg4[%c0_12, %c0_13, %c0_14, %c0_15], %17 {strides = array<i32>} : memref<2x3x3x3xf32, #tpu.memory_space<vmem>>, vector<1x3x3x3xf32>,
    %c1 = arith.constant 1 : index
    %c0_16 = arith.constant 0 : index
    %c0_17 = arith.constant 0 : index
    %c0_18 = arith.constant 0 : index
    %18 = vector.load %arg0[%c1, %c0_16, %c0_17, %c0_18] : memref<2x3x128x128xf32, #tpu.memory_space<vmem>>, vector<1x3x128x128xf32>
    %19 = vector.shape_cast %18 : vector<1x3x128x128xf32> to vector<3x128x128xf32>
    %cst_19 = arith.constant dense<0.000000e+00> : vector<128x128xf32>
    %20 = vector.multi_reduction <add>, %19, %cst_19 [0] : vector<3x128x128xf32> to vector<128x128xf32>
    %cst_20 = arith.constant dense<0.000000e+00> : vector<6x128xf32>
    %21 = tpu.matmul %0, %20, %cst_20 {dimension_numbers = #tpu.dot_dimension_numbers<[1], [0], [0], [1], [0, 0, 1, 1], [], []>, precision = #tpu.contract_precision<fp32>} : vector<6x128xf32>, vector<128x128xf32>, vector<6x128xf32> -> vector<6x128xf32>
    %cst_21 = arith.constant dense<0.000000e+00> : vector<6x6xf32>
    %22 = tpu.matmul %21, %1, %cst_21 {dimension_numbers = #tpu.dot_dimension_numbers<[1], [0], [0], [1], [0, 0, 1, 1], [], []>, precision = #tpu.contract_precision<fp32>} : vector<6x128xf32>, vector<128x6xf32>, vector<6x6xf32> -> vector<6x6xf32>
    %23 = vector.extract_strided_slice %22 {offsets = [0, 0], sizes = [3, 3], strides = [1, 1]} : vector<6x6xf32> to vector<3x3xf32>
    %24 = vector.extract_strided_slice %22 {offsets = [3, 3], sizes = [3, 3], strides = [1, 1]} : vector<6x6xf32> to vector<3x3xf32>
    %25 = arith.addf %23, %24 : vector<3x3xf32>
    %26 = vector.shape_cast %25 : vector<3x3xf32> to vector<1x3x3xf32>
    %27 = vector.broadcast %26 : vector<1x3x3xf32> to vector<3x3x3xf32>
    %28 = vector.broadcast %2 : vector<3x1x1xf32> to vector<3x3x3xf32>
    %29 = arith.addf %27, %28 : vector<3x3x3xf32>
    %c1_22 = arith.constant 1 : index
    %c0_23 = arith.constant 0 : index
    %c0_24 = arith.constant 0 : index
    %c0_25 = arith.constant 0 : index
    %30 = vector.load %arg4[%c1_22, %c0_23, %c0_24, %c0_25] : memref<2x3x3x3xf32, #tpu.memory_space<vmem>>, vector<1x3x3x3xf32>
    %31 = vector.shape_cast %30 : vector<1x3x3x3xf32> to vector<3x3x3xf32>
    %32 = vector.shape_cast %29 : vector<3x3x3xf32> to vector<1x3x3x3xf32>
    tpu.vector_store %arg4[%c1_22, %c0_23, %c0_24, %c0_25], %32 {strides = array<i32>} : memref<2x3x3x3xf32, #tpu.memory_space<vmem>>, vector<1x3x3x3xf32>,
    return
  }
}

</mosaic_0001>

<llo_original>
// kernel: synthetic_conv2d_pallas.1
$region0: #{synthetic_conv2d_pallas.1}
  #allocation0 [shape = 'u32[]', space=smem, size = 0x4, offset = 0x4, fixed_abs, tag = 'smem constant byte address 0x4 - core index']
  #allocation1 [shape = 'u32[144,128]{1,0:T(1,128)}', space=vmem, size = 0x12000, scoped, tag = 'internal scratch']
  %s0 = inlined_call_operand.vmem [shape: f32[2,3,128,128], index: 0, kind: input, shape index: {}]
  %s1 = inlined_call_operand.vmem [shape: f32[6,128], index: 1, kind: input, shape index: {}]
  %s2 = inlined_call_operand.vmem [shape: f32[128,6], index: 2, kind: input, shape index: {}]
  %s3 = inlined_call_operand.vmem [shape: f32[3,1,1], index: 3, kind: input, shape index: {}]
  %s4 = inlined_call_operand.vmem [shape: f32[2,3,3,3], index: 4, kind: output, shape index: {}]
  %s5 = sld [smem:[#allocation0]]
  $region26: #{synthetic_conv2d_pallas.1} parent=0
    _
  %s7 = ssub.s32 1, %s5
  %s8 = scalar_select 0, %s7, %s5
  // Predicated region
  $region2: #{synthetic_conv2d_pallas.1} parent=0 // pred_check
    _
  $region3: #{synthetic_conv2d_pallas.1} parent=0 // pred_check_branch
    %10 = sbr.rel (0) target = $region5
  $region4: #{synthetic_conv2d_pallas.1} parent=0 // pred_region
    _
  $region5: #{synthetic_conv2d_pallas.1} parent=0 // pred_fallthru
    _
  // Predicated region
  $region6: #{synthetic_conv2d_pallas.1} parent=0 // pred_check
    _
  $region7: #{synthetic_conv2d_pallas.1} parent=0 // pred_check_branch
    %12 = sbr.rel (0) target = $region9
  $region8: #{synthetic_conv2d_pallas.1} parent=0 // pred_region
    _
  $region9: #{synthetic_conv2d_pallas.1} parent=0 // pred_fallthru
    _
  // Predicated region
  $region10: #{synthetic_conv2d_pallas.1} parent=0 // pred_check
    _
  $region11: #{synthetic_conv2d_pallas.1} parent=0 // pred_check_branch
    %14 = sbr.rel (0) target = $region13
  $region12: #{synthetic_conv2d_pallas.1} parent=0 // pred_region
    _
  $region13: #{synthetic_conv2d_pallas.1} parent=0 // pred_fallthru
    _
  // Predicated region
  $region14: #{synthetic_conv2d_pallas.1} parent=0 // pred_check
    _
  $region15: #{synthetic_conv2d_pallas.1} parent=0 // pred_check_branch
    %16 = sbr.rel (0) target = $region17
  $region16: #{synthetic_conv2d_pallas.1} parent=0 // pred_region
    _
  $region17: #{synthetic_conv2d_pallas.1} parent=0 // pred_fallthru
    _
  %v17 = vld [vmem:[%s1] sm:$0x3f]
  %v18 = vld [vmem:[%s2] sm:$0xff]
  %v19 = vld [vmem:[%s2 + $0x8] sm:$0xff]
  %v20 = vld [vmem:[%s2 + $0x10] sm:$0xff]
  %v21 = vld [vmem:[%s2 + $0x18] sm:$0xff]
  %v22 = vld [vmem:[%s2 + $0x20] sm:$0xff]
  %v23 = vld [vmem:[%s2 + $0x28] sm:$0xff]
  %v24 = vld [vmem:[%s2 + $0x30] sm:$0xff]
  %v25 = vld [vmem:[%s2 + $0x38] sm:$0xff]
  %v26 = vld [vmem:[%s2 + $0x40] sm:$0xff]
  %v27 = vld [vmem:[%s2 + $0x48] sm:$0xff]
  %v28 = vld [vmem:[%s2 + $0x50] sm:$0xff]
  %v29 = vld [vmem:[%s2 + $0x58] sm:$0xff]
  %v30 = vld [vmem:[%s2 + $0x60] sm:$0xff]
  %v31 = vld [vmem:[%s2 + $0x68] sm:$0xff]
  %v32 = vld [vmem:[%s2 + $0x70] sm:$0xff]
  %v33 = vld [vmem:[%s2 + $0x78] sm:$0xff]
  %v34 = vld [vmem:[%s3] sm:$0x1]
  %v35 = vld [vmem:[%s3 + $0x1] sm:$0x1]
  %v36 = vld [vmem:[%s3 + $0x2] sm:$0x1]
  %v37 = vld [vmem:[%s0] sm:$0xff]
  %v38 = vld [vmem:[%s0 + $0x8] sm:$0xff]
  %v39 = vld [vmem:[%s0 + $0x10] sm:$0xff]
  %v40 = vld [vmem:[%s0 + $0x18] sm:$0xff]
  %v41 = vld [vmem:[%s0 + $0x20] sm:$0xff]
  %v42 = vld [vmem:[%s0 + $0x28] sm:$0xff]
  %v43 = vld [vmem:[%s0 + $0x30] sm:$0xff]
  %v44 = vld [vmem:[%s0 + $0x38] sm:$0xff]
  %v45 = vld [vmem:[%s0 + $0x40] sm:$0xff]
  %v46 = vld [vmem:[%s0 + $0x48] sm:$0xff]
  %v47 = vld [vmem:[%s0 + $0x50] sm:$0xff]
  %v48 = vld [vmem:[%s0 + $0x58] sm:$0xff]
  %v49 = vld [vmem:[%s0 + $0x60] sm:$0xff]
  %v50 = vld [vmem:[%s0 + $0x68] sm:$0xff]
  %v51 = vld [vmem:[%s0 + $0x70] sm:$0xff]
  %v52 = vld [vmem:[%s0 + $0x78] sm:$0xff]
  %v53 = vld [vmem:[%s0 + $0x80] sm:$0xff]
  %v54 = vld [vmem:[%s0 + $0x88] sm:$0xff]
  %v55 = vld [vmem:[%s0 + $0x90] sm:$0xff]
  %v56 = vld [vmem:[%s0 + $0x98] sm:$0xff]
  %v57 = vld [vmem:[%s0 + $0xa0] sm:$0xff]
  %v58 = vld [vmem:[%s0 + $0xa8] sm:$0xff]
  %v59 = vld [vmem:[%s0 + $0xb0] sm:$0xff]
  %v60 = vld [vmem:[%s0 + $0xb8] sm:$0xff]
  %v61 = vld [vmem:[%s0 + $0xc0] sm:$0xff]
  %v62 = vld [vmem:[%s0 + $0xc8] sm:$0xff]
  %v63 = vld [vmem:[%s0 + $0xd0] sm:$0xff]
  %v64 = vld [vmem:[%s0 + $0xd8] sm:$0xff]
  %v65 = vld [vmem:[%s0 + $0xe0] sm:$0xff]
  %v66 = vld [vmem:[%s0 + $0xe8] sm:$0xff]
  %v67 = vld [vmem:[%s0 + $0xf0] sm:$0xff]
  %v68 = vld [vmem:[%s0 + $0xf8] sm:$0xff]
  %v69 = vld [vmem:[%s0 + $0x100] sm:$0xff]
  %v70 = vld [vmem:[%s0 + $0x108] sm:$0xff]
  %v71 = vld [vmem:[%s0 + $0x110] sm:$0xff]
  %v72 = vld [vmem:[%s0 + $0x118] sm:$0xff]
  %v73 = vld [vmem:[%s0 + $0x120] sm:$0xff]
  %v74 = vld [vmem:[%s0 + $0x128] sm:$0xff]
  %v75 = vld [vmem:[%s0 + $0x130] sm:$0xff]
  %v76 = vld [vmem:[%s0 + $0x138] sm:$0xff]
  %v77 = vld [vmem:[%s0 + $0x140] sm:$0xff]
  %v78 = vld [vmem:[%s0 + $0x148] sm:$0xff]
  %v79 = vld [vmem:[%s0 + $0x150] sm:$0xff]
  %v80 = vld [vmem:[%s0 + $0x158] sm:$0xff]
  %v81 = vld [vmem:[%s0 + $0x160] sm:$0xff]
  %v82 = vld [vmem:[%s0 + $0x168] sm:$0xff]
  %v83 = vld [vmem:[%s0 + $0x170] sm:$0xff]
  %v84 = vld [vmem:[%s0 + $0x178] sm:$0xff]
  %v85 = vadd.f32 %v37, %v53
  %v86 = vadd.f32 %v85, %v69
  %v87 = vadd.f32 %v38, %v54
  %v88 = vadd.f32 %v87, %v70
  %v89 = vadd.f32 %v39, %v55
  %v90 = vadd.f32 %v89, %v71
  %v91 = vadd.f32 %v40, %v56
  %v92 = vadd.f32 %v91, %v72
  %v93 = vadd.f32 %v41, %v57
  %v94 = vadd.f32 %v93, %v73
  %v95 = vadd.f32 %v42, %v58
  %v96 = vadd.f32 %v95, %v74
  %v97 = vadd.f32 %v43, %v59
  %v98 = vadd.f32 %v97, %v75
  %v99 = vadd.f32 %v44, %v60
  %v100 = vadd.f32 %v99, %v76
  %v101 = vadd.f32 %v45, %v61
  %v102 = vadd.f32 %v101, %v77
  %v103 = vadd.f32 %v46, %v62
  %v104 = vadd.f32 %v103, %v78
  %v105 = vadd.f32 %v47, %v63
  %v106 = vadd.f32 %v105, %v79
  %v107 = vadd.f32 %v48, %v64
  %v108 = vadd.f32 %v107, %v80
  %v109 = vadd.f32 %v49, %v65
  %v110 = vadd.f32 %v109, %v81
  %v111 = vadd.f32 %v50, %v66
  %v112 = vadd.f32 %v111, %v82
  %v113 = vadd.f32 %v51, %v67
  %v114 = vadd.f32 %v113, %v83
  %v115 = vadd.f32 %v52, %v68
  %v116 = vadd.f32 %v115, %v84
  %117 = vmatprep.subr.mxu0 0.0
  %v118 = vand.u32 %v116, 4294901760
  %119 = vmatpush1.msra.mxu0 %v118
  %120 = vmatprep.subr.mxu0 0.0
  %v121 = vand.u32 %v114, 4294901760
  %122 = vmatpush1.msra.mxu0 %v121
  %123 = vmatprep.subr.mxu0 0.0
  %v124 = vand.u32 %v112, 4294901760
  %125 = vmatpush1.msra.mxu0 %v124
  %126 = vmatprep.subr.mxu0 0.0
  %v127 = vand.u32 %v110, 4294901760
  %128 = vmatpush1.msra.mxu0 %v127
  %129 = vmatprep.subr.mxu0 0.0
  %v130 = vand.u32 %v108, 4294901760
  %131 = vmatpush1.msra.mxu0 %v130
  %132 = vmatprep.subr.mxu0 0.0
  %v133 = vand.u32 %v106, 4294901760
  %134 = vmatpush1.msra.mxu0 %v133
  %135 = vmatprep.subr.mxu0 0.0
  %v136 = vand.u32 %v104, 4294901760
  %137 = vmatpush1.msra.mxu0 %v136
  %138 = vmatprep.subr.mxu0 0.0
  %v139 = vand.u32 %v102, 4294901760
  %140 = vmatpush1.msra.mxu0 %v139
  %141 = vmatprep.subr.mxu0 0.0
  %v142 = vand.u32 %v100, 4294901760
  %143 = vmatpush1.msra.mxu0 %v142
  %144 = vmatprep.subr.mxu0 0.0
  %v145 = vand.u32 %v98, 4294901760
  %146 = vmatpush1.msra.mxu0 %v145
  %147 = vmatprep.subr.mxu0 0.0
  %v148 = vand.u32 %v96, 4294901760
  %149 = vmatpush1.msra.mxu0 %v148
  %150 = vmatprep.subr.mxu0 0.0
  %v151 = vand.u32 %v94, 4294901760
  %152 = vmatpush1.msra.mxu0 %v151
  %153 = vmatprep.subr.mxu0 0.0
  %v154 = vand.u32 %v92, 4294901760
  %155 = vmatpush1.msra.mxu0 %v154
  %156 = vmatprep.subr.mxu0 0.0
  %v157 = vand.u32 %v90, 4294901760
  %158 = vmatpush1.msra.mxu0 %v157
  %159 = vmatprep.subr.mxu0 0.0
  %v160 = vand.u32 %v88, 4294901760
  %161 = vmatpush1.msra.mxu0 %v160
  %162 = vmatprep.subr.mxu0 0.0
  %v163 = vand.u32 %v86, 4294901760
  %164 = vmatpush1.msra.mxu0 %v163
  %165 = vmatprep.subr.mxu0 0.0
  %166 = vmatpush2.msra.mxu0 0.0
  %167 = vmatprep.subr.mxu0 0.0
  %168 = vmatpush2.msra.mxu0 0.0
  %169 = vmatprep.subr.mxu0 0.0
  %170 = vmatpush2.msra.mxu0 0.0
  %171 = vmatprep.subr.mxu0 0.0
  %172 = vmatpush2.msra.mxu0 0.0
  %173 = vmatprep.subr.mxu0 0.0
  %174 = vmatpush2.msra.mxu0 0.0
  %175 = vmatprep.subr.mxu0 0.0
  %176 = vmatpush2.msra.mxu0 0.0
  %177 = vmatprep.subr.mxu0 0.0
  %178 = vmatpush2.msra.mxu0 0.0
  %179 = vmatprep.subr.mxu0 0.0
  %180 = vmatpush2.msra.mxu0 0.0
  %181 = vmatprep.subr.mxu0 0.0
  %182 = vmatpush2.msra.mxu0 0.0
  %183 = vmatprep.subr.mxu0 0.0
  %184 = vmatpush2.msra.mxu0 0.0
  %185 = vmatprep.subr.mxu0 0.0
  %186 = vmatpush2.msra.mxu0 0.0
  %187 = vmatprep.subr.mxu0 0.0
  %188 = vmatpush2.msra.mxu0 0.0
  %189 = vmatprep.subr.mxu0 0.0
  %190 = vmatpush2.msra.mxu0 0.0
  %191 = vmatprep.subr.mxu0 0.0
  %192 = vmatpush2.msra.mxu0 0.0
  %193 = vmatprep.subr.mxu0 0.0
  %194 = vmatpush2.msra.mxu0 0.0
  %195 = vmatprep.subr.mxu0 0.0
  %196 = vmatpush2.msra.mxu0 0.0
  %197 = vmatprep.mubr.f32.mxu0 0.0
  %v198 = vand.u32 %v17, 4294901760
  %v199 = vsub.f32 %v17, %v198
  %v200 = vand.u32 %v199, 4294901760
  %v201 = vsub.f32 %v199, %v200
  %v202 = vand.u32 %v201, 4294901760
  %203 = vmatmul.mubr.f32.gmra.mxu0 %v202
  %v204 = vpop.f32.mrf.mxu0
  %v205 = vadd.f32 0.0, %v204
  %v206 = vpop.f32.mrf.mxu0
  %207 = vdwg.mxu0
  %208 = vmatprep.subr.mxu0 0.0
  %v209 = vand.u32 %v116, 4294901760
  %v210 = vsub.f32 %v116, %v209
  %v211 = vand.u32 %v210, 4294901760
  %v212 = vsub.f32 %v210, %v211
  %v213 = vand.u32 %v212, 4294901760
  %214 = vmatpush1.msra.mxu0 %v213
  %215 = vmatprep.subr.mxu0 0.0
  %v216 = vand.u32 %v114, 4294901760
  %v217 = vsub.f32 %v114, %v216
  %v218 = vand.u32 %v217, 4294901760
  %v219 = vsub.f32 %v217, %v218
  %v220 = vand.u32 %v219, 4294901760
  %221 = vmatpush1.msra.mxu0 %v220
  %222 = vmatprep.subr.mxu0 0.0
  %v223 = vand.u32 %v112, 4294901760
  %v224 = vsub.f32 %v112, %v223
  %v225 = vand.u32 %v224, 4294901760
  %v226 = vsub.f32 %v224, %v225
  %v227 = vand.u32 %v226, 4294901760
  %228 = vmatpush1.msra.mxu0 %v227
  %229 = vmatprep.subr.mxu0 0.0
  %v230 = vand.u32 %v110, 4294901760
  %v231 = vsub.f32 %v110, %v230
  %v232 = vand.u32 %v231, 4294901760
  %v233 = vsub.f32 %v231, %v232
  %v234 = vand.u32 %v233, 4294901760
  %235 = vmatpush1.msra.mxu0 %v234
  %236 = vmatprep.subr.mxu0 0.0
  %v237 = vand.u32 %v108, 4294901760
  %v238 = vsub.f32 %v108, %v237
  %v239 = vand.u32 %v238, 4294901760
  %v240 = vsub.f32 %v238, %v239
  %v241 = vand.u32 %v240, 4294901760
  %242 = vmatpush1.msra.mxu0 %v241
  %243 = vmatprep.subr.mxu0 0.0
  %v244 = vand.u32 %v106, 4294901760
  %v245 = vsub.f32 %v106, %v244
  %v246 = vand.u32 %v245, 4294901760
  %v247 = vsub.f32 %v245, %v246
  %v248 = vand.u32 %v247, 4294901760
  %249 = vmatpush1.msra.mxu0 %v248
  %250 = vmatprep.subr.mxu0 0.0
  %v251 = vand.u32 %v104, 4294901760
  %v252 = vsub.f32 %v104, %v251
  %v253 = vand.u32 %v252, 4294901760
  %v254 = vsub.f32 %v252, %v253
  %v255 = vand.u32 %v254, 4294901760
  %256 = vmatpush1.msra.mxu0 %v255
  %257 = vmatprep.subr.mxu0 0.0
  %v258 = vand.u32 %v102, 4294901760
  %v259 = vsub.f32 %v102, %v258
  %v260 = vand.u32 %v259, 4294901760
  %v261 = vsub.f32 %v259, %v260
  %v262 = vand.u32 %v261, 4294901760
  %263 = vmatpush1.msra.mxu0 %v262
  %264 = vmatprep.subr.mxu0 0.0
  %v265 = vand.u32 %v100, 4294901760
  %v266 = vsub.f32 %v100, %v265
  %v267 = vand.u32 %v266, 4294901760
  %v268 = vsub.f32 %v266, %v267
  %v269 = vand.u32 %v268, 4294901760
  %270 = vmatpush1.msra.mxu0 %v269
  %271 = vmatprep.subr.mxu0 0.0
  %v272 = vand.u32 %v98, 4294901760
  %v273 = vsub.f32 %v98, %v272
  %v274 = vand.u32 %v273, 4294901760
  %v275 = vsub.f32 %v273, %v274
  %v276 = vand.u32 %v275, 4294901760
  %277 = vmatpush1.msra.mxu0 %v276
  %278 = vmatprep.subr.mxu0 0.0
  %v279 = vand.u32 %v96, 4294901760
  %v280 = vsub.f32 %v96, %v279
  %v281 = vand.u32 %v280, 4294901760
  %v282 = vsub.f32 %v280, %v281
  %v283 = vand.u32 %v282, 4294901760
  %284 = vmatpush1.msra.mxu0 %v283
  %285 = vmatprep.subr.mxu0 0.0
  %v286 = vand.u32 %v94, 4294901760
  %v287 = vsub.f32 %v94, %v286
  %v288 = vand.u32 %v287, 4294901760
  %v289 = vsub.f32 %v287, %v288
  %v290 = vand.u32 %v289, 4294901760
  %291 = vmatpush1.msra.mxu0 %v290
  %292 = vmatprep.subr.mxu0 0.0
  %v293 = vand.u32 %v92, 4294901760
  %v294 = vsub.f32 %v92, %v293
  %v295 = vand.u32 %v294, 4294901760
  %v296 = vsub.f32 %v294, %v295
  %v297 = vand.u32 %v296, 4294901760
  %298 = vmatpush1.msra.mxu0 %v297
  %299 = vmatprep.subr.mxu0 0.0
  %v300 = vand.u32 %v90, 4294901760
  %v301 = vsub.f32 %v90, %v300
  %v302 = vand.u32 %v301, 4294901760
  %v303 = vsub.f32 %v301, %v302
  %v304 = vand.u32 %v303, 4294901760
  %305 = vmatpush1.msra.mxu0 %v304
  %306 = vmatprep.subr.mxu0 0.0
  %v307 = vand.u32 %v88, 4294901760
  %v308 = vsub.f32 %v88, %v307
  %v309 = vand.u32 %v308, 4294901760
  %v310 = vsub.f32 %v308, %v309
  %v311 = vand.u32 %v310, 4294901760
  %312 = vmatpush1.msra.mxu0 %v311
  %313 = vmatprep.subr.mxu0 0.0
  %v314 = vand.u32 %v86, 4294901760
  %v315 = vsub.f32 %v86, %v314
  %v316 = vand.u32 %v315, 4294901760
  %v317 = vsub.f32 %v315, %v316
  %v318 = vand.u32 %v317, 4294901760
  %319 = vmatpush1.msra.mxu0 %v318
  %320 = vmatprep.subr.mxu0 0.0
  %321 = vmatpush2.msra.mxu0 0.0
  %322 = vmatprep.subr.mxu0 0.0
  %323 = vmatpush2.msra.mxu0 0.0
  %324 = vmatprep.subr.mxu0 0.0
  %325 = vmatpush2.msra.mxu0 0.0
  %326 = vmatprep.subr.mxu0 0.0
  %327 = vmatpush2.msra.mxu0 0.0
  %328 = vmatprep.subr.mxu0 0.0
  %329 = vmatpush2.msra.mxu0 0.0
  %330 = vmatprep.subr.mxu0 0.0
  %331 = vmatpush2.msra.mxu0 0.0
  %332 = vmatprep.subr.mxu0 0.0
  %333 = vmatpush2.msra.mxu0 0.0
  %334 = vmatprep.subr.mxu0 0.0
  %335 = vmatpush2.msra.mxu0 0.0
  %336 = vmatprep.subr.mxu0 0.0
  %337 = vmatpush2.msra.mxu0 0.0
  %338 = vmatprep.subr.mxu0 0.0
  %339 = vmatpush2.msra.mxu0 0.0
  %340 = vmatprep.subr.mxu0 0.0
  %341 = vmatpush2.msra.mxu0 0.0
  %342 = vmatprep.subr.mxu0 0.0
  %343 = vmatpush2.msra.mxu0 0.0
  %344 = vmatprep.subr.mxu0 0.0
  %345 = vmatpush2.msra.mxu0 0.0
  %346 = vmatprep.subr.mxu0 0.0
  %347 = vmatpush2.msra.mxu0 0.0
  %348 = vmatprep.subr.mxu0 0.0
  %349 = vmatpush2.msra.mxu0 0.0
  %350 = vmatprep.subr.mxu0 0.0
  %351 = vmatpush2.msra.mxu0 0.0
  %352 = vmatprep.mubr.f32.mxu0 0.0
  %v353 = vand.u32 %v17, 4294901760
  %354 = vmatmul.mubr.f32.gmra.mxu0 %v353
  %v355 = vpop.f32.mrf.mxu0
  %v356 = vadd.f32 %v205, %v355
  %v357 = vpop.f32.mrf.mxu0
  %358 = vdwg.mxu0
  %359 = vmatprep.subr.mxu0 0.0
  %v360 = vand.u32 %v116, 4294901760
  %v361 = vsub.f32 %v116, %v360
  %362 = vmatpush1.msra.mxu0 %v361
  %363 = vmatprep.subr.mxu0 0.0
  %v364 = vand.u32 %v114, 4294901760
  %v365 = vsub.f32 %v114, %v364
  %366 = vmatpush1.msra.mxu0 %v365
  %367 = vmatprep.subr.mxu0 0.0
  %v368 = vand.u32 %v112, 4294901760
  %v369 = vsub.f32 %v112, %v368
  %370 = vmatpush1.msra.mxu0 %v369
  %371 = vmatprep.subr.mxu0 0.0
  %v372 = vand.u32 %v110, 4294901760
  %v373 = vsub.f32 %v110, %v372
  %374 = vmatpush1.msra.mxu0 %v373
  %375 = vmatprep.subr.mxu0 0.0
  %v376 = vand.u32 %v108, 4294901760
  %v377 = vsub.f32 %v108, %v376
  %378 = vmatpush1.msra.mxu0 %v377
  %379 = vmatprep.subr.mxu0 0.0
  %v380 = vand.u32 %v106, 4294901760
  %v381 = vsub.f32 %v106, %v380
  %382 = vmatpush1.msra.mxu0 %v381
  %383 = vmatprep.subr.mxu0 0.0
  %v384 = vand.u32 %v104, 4294901760
  %v385 = vsub.f32 %v104, %v384
  %386 = vmatpush1.msra.mxu0 %v385
  %387 = vmatprep.subr.mxu0 0.0
  %v388 = vand.u32 %v102, 4294901760
  %v389 = vsub.f32 %v102, %v388
  %390 = vmatpush1.msra.mxu0 %v389
  %391 = vmatprep.subr.mxu0 0.0
  %v392 = vand.u32 %v100, 4294901760
  %v393 = vsub.f32 %v100, %v392
  %394 = vmatpush1.msra.mxu0 %v393
  %395 = vmatprep.subr.mxu0 0.0
  %v396 = vand.u32 %v98, 4294901760
  %v397 = vsub.f32 %v98, %v396
  %398 = vmatpush1.msra.mxu0 %v397
  %399 = vmatprep.subr.mxu0 0.0
  %v400 = vand.u32 %v96, 4294901760
  %v401 = vsub.f32 %v96, %v400
  %402 = vmatpush1.msra.mxu0 %v401
  %403 = vmatprep.subr.mxu0 0.0
  %v404 = vand.u32 %v94, 4294901760
  %v405 = vsub.f32 %v94, %v404
  %406 = vmatpush1.msra.mxu0 %v405
  %407 = vmatprep.subr.mxu0 0.0
  %v408 = vand.u32 %v92, 4294901760
  %v409 = vsub.f32 %v92, %v408
  %410 = vmatpush1.msra.mxu0 %v409
  %411 = vmatprep.subr.mxu0 0.0
  %v412 = vand.u32 %v90, 4294901760
  %v413 = vsub.f32 %v90, %v412
  %414 = vmatpush1.msra.mxu0 %v413
  %415 = vmatprep.subr.mxu0 0.0
  %v416 = vand.u32 %v88, 4294901760
  %v417 = vsub.f32 %v88, %v416
  %418 = vmatpush1.msra.mxu0 %v417
  %419 = vmatprep.subr.mxu0 0.0
  %v420 = vand.u32 %v86, 4294901760
  %v421 = vsub.f32 %v86, %v420
  %422 = vmatpush1.msra.mxu0 %v421
  %423 = vmatprep.subr.mxu0 0.0
  %424 = vmatpush2.msra.mxu0 0.0
  %425 = vmatprep.subr.mxu0 0.0
  %426 = vmatpush2.msra.mxu0 0.0
  %427 = vmatprep.subr.mxu0 0.0
  %428 = vmatpush2.msra.mxu0 0.0
  %429 = vmatprep.subr.mxu0 0.0
  %430 = vmatpush2.msra.mxu0 0.0
  %431 = vmatprep.subr.mxu0 0.0
  %432 = vmatpush2.msra.mxu0 0.0
  %433 = vmatprep.subr.mxu0 0.0
  %434 = vmatpush2.msra.mxu0 0.0
  %435 = vmatprep.subr.mxu0 0.0
  %436 = vmatpush2.msra.mxu0 0.0
  %437 = vmatprep.subr.mxu0 0.0
  %438 = vmatpush2.msra.mxu0 0.0
  %439 = vmatprep.subr.mxu0 0.0
  %440 = vmatpush2.msra.mxu0 0.0
  %441 = vmatprep.subr.mxu0 0.0
  %442 = vmatpush2.msra.mxu0 0.0
  %443 = vmatprep.subr.mxu0 0.0
  %444 = vmatpush2.msra.mxu0 0.0
  %445 = vmatprep.subr.mxu0 0.0
  %446 = vmatpush2.msra.mxu0 0.0
  %447 = vmatprep.subr.mxu0 0.0
  %448 = vmatpush2.msra.mxu0 0.0
  %449 = vmatprep.subr.mxu0 0.0
  %450 = vmatpush2.msra.mxu0 0.0
  %451 = vmatprep.subr.mxu0 0.0
  %452 = vmatpush2.msra.mxu0 0.0
  %453 = vmatprep.subr.mxu0 0.0
  %454 = vmatpush2.msra.mxu0 0.0
  %455 = vmatprep.mubr.f32.mxu0 0.0
  %v456 = vand.u32 %v17, 4294901760
  %v457 = vsub.f32 %v17, %v456
  %458 = vmatmul.mubr.f32.gmra.mxu0 %v457
  %v459 = vpop.f32.mrf.mxu0
  %v460 = vadd.f32 %v356, %v459
  %v461 = vpop.f32.mrf.mxu0
  %462 = vdwg.mxu0
  %463 = vmatprep.subr.mxu0 0.0
  %v464 = vand.u32 %v116, 4294901760
  %465 = vmatpush1.msra.mxu0 %v464
  %466 = vmatprep.subr.mxu0 0.0
  %v467 = vand.u32 %v114, 4294901760
  %468 = vmatpush1.msra.mxu0 %v467
  %469 = vmatprep.subr.mxu0 0.0
  %v470 = vand.u32 %v112, 4294901760
  %471 = vmatpush1.msra.mxu0 %v470
  %472 = vmatprep.subr.mxu0 0.0
  %v473 = vand.u32 %v110, 4294901760
  %474 = vmatpush1.msra.mxu0 %v473
  %475 = vmatprep.subr.mxu0 0.0
  %v476 = vand.u32 %v108, 4294901760
  %477 = vmatpush1.msra.mxu0 %v476
  %478 = vmatprep.subr.mxu0 0.0
  %v479 = vand.u32 %v106, 4294901760
  %480 = vmatpush1.msra.mxu0 %v479
  %481 = vmatprep.subr.mxu0 0.0
  %v482 = vand.u32 %v104, 4294901760
  %483 = vmatpush1.msra.mxu0 %v482
  %484 = vmatprep.subr.mxu0 0.0
  %v485 = vand.u32 %v102, 4294901760
  %486 = vmatpush1.msra.mxu0 %v485
  %487 = vmatprep.subr.mxu0 0.0
  %v488 = vand.u32 %v100, 4294901760
  %489 = vmatpush1.msra.mxu0 %v488
  %490 = vmatprep.subr.mxu0 0.0
  %v491 = vand.u32 %v98, 4294901760
  %492 = vmatpush1.msra.mxu0 %v491
  %493 = vmatprep.subr.mxu0 0.0
  %v494 = vand.u32 %v96, 4294901760
  %495 = vmatpush1.msra.mxu0 %v494
  %496 = vmatprep.subr.mxu0 0.0
  %v497 = vand.u32 %v94, 4294901760
  %498 = vmatpush1.msra.mxu0 %v497
  %499 = vmatprep.subr.mxu0 0.0
  %v500 = vand.u32 %v92, 4294901760
  %501 = vmatpush1.msra.mxu0 %v500
  %502 = vmatprep.subr.mxu0 0.0
  %v503 = vand.u32 %v90, 4294901760
  %504 = vmatpush1.msra.mxu0 %v503
  %505 = vmatprep.subr.mxu0 0.0
  %v506 = vand.u32 %v88, 4294901760
  %507 = vmatpush1.msra.mxu0 %v506
  %508 = vmatprep.subr.mxu0 0.0
  %v509 = vand.u32 %v86, 4294901760
  %510 = vmatpush1.msra.mxu0 %v509
  %511 = vmatprep.subr.mxu0 0.0
  %512 = vmatpush2.msra.mxu0 0.0
  %513 = vmatprep.subr.mxu0 0.0
  %514 = vmatpush2.msra.mxu0 0.0
  %515 = vmatprep.subr.mxu0 0.0
  %516 = vmatpush2.msra.mxu0 0.0
  %517 = vmatprep.subr.mxu0 0.0
  %518 = vmatpush2.msra.mxu0 0.0
  %519 = vmatprep.subr.mxu0 0.0
  %520 = vmatpush2.msra.mxu0 0.0
  %521 = vmatprep.subr.mxu0 0.0
  %522 = vmatpush2.msra.mxu0 0.0
  %523 = vmatprep.subr.mxu0 0.0
  %524 = vmatpush2.msra.mxu0 0.0
  %525 = vmatprep.subr.mxu0 0.0
  %526 = vmatpush2.msra.mxu0 0.0
  %527 = vmatprep.subr.mxu0 0.0
  %528 = vmatpush2.msra.mxu0 0.0
  %529 = vmatprep.subr.mxu0 0.0
  %530 = vmatpush2.msra.mxu0 0.0
  %531 = vmatprep.subr.mxu0 0.0
  %532 = vmatpush2.msra.mxu0 0.0
  %533 = vmatprep.subr.mxu0 0.0
  %534 = vmatpush2.msra.mxu0 0.0
  %535 = vmatprep.subr.mxu0 0.0
  %536 = vmatpush2.msra.mxu0 0.0
  %537 = vmatprep.subr.mxu0 0.0
  %538 = vmatpush2.msra.mxu0 0.0
  %539 = vmatprep.subr.mxu0 0.0
  %540 = vmatpush2.msra.mxu0 0.0
  %541 = vmatprep.subr.mxu0 0.0
  %542 = vmatpush2.msra.mxu0 0.0
  %543 = vmatprep.mubr.f32.mxu0 0.0
  %v544 = vand.u32 %v17, 4294901760
  %v545 = vsub.f32 %v17, %v544
  %v546 = vand.u32 %v545, 4294901760
  %547 = vmatmul.mubr.f32.gmra.mxu0 %v546
  %v548 = vpop.f32.mrf.mxu0
  %v549 = vadd.f32 %v460, %v548
  %v550 = vpop.f32.mrf.mxu0
  %551 = vdwg.mxu0
  %552 = vmatprep.subr.mxu0 0.0
  %v553 = vand.u32 %v116, 4294901760
  %v554 = vsub.f32 %v116, %v553
  %v555 = vand.u32 %v554, 4294901760
  %556 = vmatpush1.msra.mxu0 %v555
  %557 = vmatprep.subr.mxu0 0.0
  %v558 = vand.u32 %v114, 4294901760
  %v559 = vsub.f32 %v114, %v558
  %v560 = vand.u32 %v559, 4294901760
  %561 = vmatpush1.msra.mxu0 %v560
  %562 = vmatprep.subr.mxu0 0.0
  %v563 = vand.u32 %v112, 4294901760
  %v564 = vsub.f32 %v112, %v563
  %v565 = vand.u32 %v564, 4294901760
  %566 = vmatpush1.msra.mxu0 %v565
  %567 = vmatprep.subr.mxu0 0.0
  %v568 = vand.u32 %v110, 4294901760
  %v569 = vsub.f32 %v110, %v568
  %v570 = vand.u32 %v569, 4294901760
  %571 = vmatpush1.msra.mxu0 %v570
  %572 = vmatprep.subr.mxu0 0.0
  %v573 = vand.u32 %v108, 4294901760
  %v574 = vsub.f32 %v108, %v573
  %v575 = vand.u32 %v574, 4294901760
  %576 = vmatpush1.msra.mxu0 %v575
  %577 = vmatprep.subr.mxu0 0.0
  %v578 = vand.u32 %v106, 4294901760
  %v579 = vsub.f32 %v106, %v578
  %v580 = vand.u32 %v579, 4294901760
  %581 = vmatpush1.msra.mxu0 %v580
  %582 = vmatprep.subr.mxu0 0.0
  %v583 = vand.u32 %v104, 4294901760
  %v584 = vsub.f32 %v104, %v583
  %v585 = vand.u32 %v584, 4294901760
  %586 = vmatpush1.msra.mxu0 %v585
  %587 = vmatprep.subr.mxu0 0.0
  %v588 = vand.u32 %v102, 4294901760
  %v589 = vsub.f32 %v102, %v588
  %v590 = vand.u32 %v589, 4294901760
  %591 = vmatpush1.msra.mxu0 %v590
  %592 = vmatprep.subr.mxu0 0.0
  %v593 = vand.u32 %v100, 4294901760
  %v594 = vsub.f32 %v100, %v593
  %v595 = vand.u32 %v594, 4294901760
  %596 = vmatpush1.msra.mxu0 %v595
  %597 = vmatprep.subr.mxu0 0.0
  %v598 = vand.u32 %v98, 4294901760
  %v599 = vsub.f32 %v98, %v598
  %v600 = vand.u32 %v599, 4294901760
  %601 = vmatpush1.msra.mxu0 %v600
  %602 = vmatprep.subr.mxu0 0.0
  %v603 = vand.u32 %v96, 4294901760
  %v604 = vsub.f32 %v96, %v603
  %v605 = vand.u32 %v604, 4294901760
  %606 = vmatpush1.msra.mxu0 %v605
  %607 = vmatprep.subr.mxu0 0.0
  %v608 = vand.u32 %v94, 4294901760
  %v609 = vsub.f32 %v94, %v608
  %v610 = vand.u32 %v609, 4294901760
  %611 = vmatpush1.msra.mxu0 %v610
  %612 = vmatprep.subr.mxu0 0.0
  %v613 = vand.u32 %v92, 4294901760
  %v614 = vsub.f32 %v92, %v613
  %v615 = vand.u32 %v614, 4294901760
  %616 = vmatpush1.msra.mxu0 %v615
  %617 = vmatprep.subr.mxu0 0.0
  %v618 = vand.u32 %v90, 4294901760
  %v619 = vsub.f32 %v90, %v618
  %v620 = vand.u32 %v619, 4294901760
  %621 = vmatpush1.msra.mxu0 %v620
  %622 = vmatprep.subr.mxu0 0.0
  %v623 = vand.u32 %v88, 4294901760
  %v624 = vsub.f32 %v88, %v623
  %v625 = vand.u32 %v624, 4294901760
  %626 = vmatpush1.msra.mxu0 %v625
  %627 = vmatprep.subr.mxu0 0.0
  %v628 = vand.u32 %v86, 4294901760
  %v629 = vsub.f32 %v86, %v628
  %v630 = vand.u32 %v629, 4294901760
  %631 = vmatpush1.msra.mxu0 %v630
  %632 = vmatprep.subr.mxu0 0.0
  %633 = vmatpush2.msra.mxu0 0.0
  %634 = vmatprep.subr.mxu0 0.0
  %635 = vmatpush2.msra.mxu0 0.0
  %636 = vmatprep.subr.mxu0 0.0
  %637 = vmatpush2.msra.mxu0 0.0
  %638 = vmatprep.subr.mxu0 0.0
  %639 = vmatpush2.msra.mxu0 0.0
  %640 = vmatprep.subr.mxu0 0.0
  %641 = vmatpush2.msra.mxu0 0.0
  %642 = vmatprep.subr.mxu0 0.0
  %643 = vmatpush2.msra.mxu0 0.0
  %644 = vmatprep.subr.mxu0 0.0
  %645 = vmatpush2.msra.mxu0 0.0
  %646 = vmatprep.subr.mxu0 0.0
  %647 = vmatpush2.msra.mxu0 0.0
  %648 = vmatprep.subr.mxu0 0.0
  %649 = vmatpush2.msra.mxu0 0.0
  %650 = vmatprep.subr.mxu0 0.0
  %651 = vmatpush2.msra.mxu0 0.0
  %652 = vmatprep.subr.mxu0 0.0
  %653 = vmatpush2.msra.mxu0 0.0
  %654 = vmatprep.subr.mxu0 0.0
  %655 = vmatpush2.msra.mxu0 0.0
  %656 = vmatprep.subr.mxu0 0.0
  %657 = vmatpush2.msra.mxu0 0.0
  %658 = vmatprep.subr.mxu0 0.0
  %659 = vmatpush2.msra.mxu0 0.0
  %660 = vmatprep.subr.mxu0 0.0
  %661 = vmatpush2.msra.mxu0 0.0
  %662 = vmatprep.subr.mxu0 0.0
  %663 = vmatpush2.msra.mxu0 0.0
  %664 = vmatprep.mubr.f32.mxu0 0.0
  %v665 = vand.u32 %v17, 4294901760
  %666 = vmatmul.mubr.f32.gmra.mxu0 %v665
  %v667 = vpop.f32.mrf.mxu0
  %v668 = vadd.f32 %v549, %v667
  %v669 = vpop.f32.mrf.mxu0
  %670 = vdwg.mxu0
  %671 = vmatprep.subr.mxu0 0.0
  %v672 = vand.u32 %v116, 4294901760
  %673 = vmatpush1.msra.mxu0 %v672
  %674 = vmatprep.subr.mxu0 0.0
  %v675 = vand.u32 %v114, 4294901760
  %676 = vmatpush1.msra.mxu0 %v675
  %677 = vmatprep.subr.mxu0 0.0
  %v678 = vand.u32 %v112, 4294901760
  %679 = vmatpush1.msra.mxu0 %v678
  %680 = vmatprep.subr.mxu0 0.0
  %v681 = vand.u32 %v110, 4294901760
  %682 = vmatpush1.msra.mxu0 %v681
  %683 = vmatprep.subr.mxu0 0.0
  %v684 = vand.u32 %v108, 4294901760
  %685 = vmatpush1.msra.mxu0 %v684
  %686 = vmatprep.subr.mxu0 0.0
  %v687 = vand.u32 %v106, 4294901760
  %688 = vmatpush1.msra.mxu0 %v687
  %689 = vmatprep.subr.mxu0 0.0
  %v690 = vand.u32 %v104, 4294901760
  %691 = vmatpush1.msra.mxu0 %v690
  %692 = vmatprep.subr.mxu0 0.0
  %v693 = vand.u32 %v102, 4294901760
  %694 = vmatpush1.msra.mxu0 %v693
  %695 = vmatprep.subr.mxu0 0.0
  %v696 = vand.u32 %v100, 4294901760
  %697 = vmatpush1.msra.mxu0 %v696
  %698 = vmatprep.subr.mxu0 0.0
  %v699 = vand.u32 %v98, 4294901760
  %700 = vmatpush1.msra.mxu0 %v699
  %701 = vmatprep.subr.mxu0 0.0
  %v702 = vand.u32 %v96, 4294901760
  %703 = vmatpush1.msra.mxu0 %v702
  %704 = vmatprep.subr.mxu0 0.0
  %v705 = vand.u32 %v94, 4294901760
  %706 = vmatpush1.msra.mxu0 %v705
  %707 = vmatprep.subr.mxu0 0.0
  %v708 = vand.u32 %v92, 4294901760
  %709 = vmatpush1.msra.mxu0 %v708
  %710 = vmatprep.subr.mxu0 0.0
  %v711 = vand.u32 %v90, 4294901760
  %712 = vmatpush1.msra.mxu0 %v711
  %713 = vmatprep.subr.mxu0 0.0
  %v714 = vand.u32 %v88, 4294901760
  %715 = vmatpush1.msra.mxu0 %v714
  %716 = vmatprep.subr.mxu0 0.0
  %v717 = vand.u32 %v86, 4294901760
  %718 = vmatpush1.msra.mxu0 %v717
  %719 = vmatprep.subr.mxu0 0.0
  %720 = vmatpush2.msra.mxu0 0.0
  %721 = vmatprep.subr.mxu0 0.0
  %722 = vmatpush2.msra.mxu0 0.0
  %723 = vmatprep.subr.mxu0 0.0
  %724 = vmatpush2.msra.mxu0 0.0
  %725 = vmatprep.subr.mxu0 0.0
  %726 = vmatpush2.msra.mxu0 0.0
  %727 = vmatprep.subr.mxu0 0.0
  %728 = vmatpush2.msra.mxu0 0.0
  %729 = vmatprep.subr.mxu0 0.0
  %730 = vmatpush2.msra.mxu0 0.0
  %731 = vmatprep.subr.mxu0 0.0
  %732 = vmatpush2.msra.mxu0 0.0
  %733 = vmatprep.subr.mxu0 0.0
  %734 = vmatpush2.msra.mxu0 0.0
  %735 = vmatprep.subr.mxu0 0.0
  %736 = vmatpush2.msra.mxu0 0.0
  %737 = vmatprep.subr.mxu0 0.0
  %738 = vmatpush2.msra.mxu0 0.0
  %739 = vmatprep.subr.mxu0 0.0
  %740 = vmatpush2.msra.mxu0 0.0
  %741 = vmatprep.subr.mxu0 0.0
  %742 = vmatpush2.msra.mxu0 0.0
  %743 = vmatprep.subr.mxu0 0.0
  %744 = vmatpush2.msra.mxu0 0.0
  %745 = vmatprep.subr.mxu0 0.0
  %746 = vmatpush2.msra.mxu0 0.0
  %747 = vmatprep.subr.mxu0 0.0
  %748 = vmatpush2.msra.mxu0 0.0
  %749 = vmatprep.subr.mxu0 0.0
  %750 = vmatpush2.msra.mxu0 0.0
  %751 = vmatprep.mubr.f32.mxu0 0.0
  %v752 = vand.u32 %v17, 4294901760
  %753 = vmatmul.mubr.f32.gmra.mxu0 %v752
  %v754 = vpop.f32.mrf.mxu0
  %v755 = vadd.f32 %v668, %v754
  %v756 = vpop.f32.mrf.mxu0
  %757 = vdwg.mxu0
  %758 = vmatprep.subr.mxu0 0.0
  %v759 = vand.u32 %v33, 4294901760
  %760 = vmatpush1.msra.mxu0 %v759
  %761 = vmatprep.subr.mxu0 0.0
  %v762 = vand.u32 %v32, 4294901760
  %763 = vmatpush1.msra.mxu0 %v762
  %764 = vmatprep.subr.mxu0 0.0
  %v765 = vand.u32 %v31, 4294901760
  %766 = vmatpush1.msra.mxu0 %v765
  %767 = vmatprep.subr.mxu0 0.0
  %v768 = vand.u32 %v30, 4294901760
  %769 = vmatpush1.msra.mxu0 %v768
  %770 = vmatprep.subr.mxu0 0.0
  %v771 = vand.u32 %v29, 4294901760
  %772 = vmatpush1.msra.mxu0 %v771
  %773 = vmatprep.subr.mxu0 0.0
  %v774 = vand.u32 %v28, 4294901760
  %775 = vmatpush1.msra.mxu0 %v774
  %776 = vmatprep.subr.mxu0 0.0
  %v777 = vand.u32 %v27, 4294901760
  %778 = vmatpush1.msra.mxu0 %v777
  %779 = vmatprep.subr.mxu0 0.0
  %v780 = vand.u32 %v26, 4294901760
  %781 = vmatpush1.msra.mxu0 %v780
  %782 = vmatprep.subr.mxu0 0.0
  %v783 = vand.u32 %v25, 4294901760
  %784 = vmatpush1.msra.mxu0 %v783
  %785 = vmatprep.subr.mxu0 0.0
  %v786 = vand.u32 %v24, 4294901760
  %787 = vmatpush1.msra.mxu0 %v786
  %788 = vmatprep.subr.mxu0 0.0
  %v789 = vand.u32 %v23, 4294901760
  %790 = vmatpush1.msra.mxu0 %v789
  %791 = vmatprep.subr.mxu0 0.0
  %v792 = vand.u32 %v22, 4294901760
  %793 = vmatpush1.msra.mxu0 %v792
  %794 = vmatprep.subr.mxu0 0.0
  %v795 = vand.u32 %v21, 4294901760
  %796 = vmatpush1.msra.mxu0 %v795
  %797 = vmatprep.subr.mxu0 0.0
  %v798 = vand.u32 %v20, 4294901760
  %799 = vmatpush1.msra.mxu0 %v798
  %800 = vmatprep.subr.mxu0 0.0
  %v801 = vand.u32 %v19, 4294901760
  %802 = vmatpush1.msra.mxu0 %v801
  %803 = vmatprep.subr.mxu0 0.0
  %v804 = vand.u32 %v18, 4294901760
  %805 = vmatpush1.msra.mxu0 %v804
  %806 = vmatprep.subr.mxu0 0.0
  %807 = vmatpush2.msra.mxu0 0.0
  %808 = vmatprep.subr.mxu0 0.0
  %809 = vmatpush2.msra.mxu0 0.0
  %810 = vmatprep.subr.mxu0 0.0
  %811 = vmatpush2.msra.mxu0 0.0
  %812 = vmatprep.subr.mxu0 0.0
  %813 = vmatpush2.msra.mxu0 0.0
  %814 = vmatprep.subr.mxu0 0.0
  %815 = vmatpush2.msra.mxu0 0.0
  %816 = vmatprep.subr.mxu0 0.0
  %817 = vmatpush2.msra.mxu0 0.0
  %818 = vmatprep.subr.mxu0 0.0
  %819 = vmatpush2.msra.mxu0 0.0
  %820 = vmatprep.subr.mxu0 0.0
  %821 = vmatpush2.msra.mxu0 0.0
  %822 = vmatprep.subr.mxu0 0.0
  %823 = vmatpush2.msra.mxu0 0.0
  %824 = vmatprep.subr.mxu0 0.0
  %825 = vmatpush2.msra.mxu0 0.0
  %826 = vmatprep.subr.mxu0 0.0
  %827 = vmatpush2.msra.mxu0 0.0
  %828 = vmatprep.subr.mxu0 0.0
  %829 = vmatpush2.msra.mxu0 0.0
  %830 = vmatprep.subr.mxu0 0.0
  %831 = vmatpush2.msra.mxu0 0.0
  %832 = vmatprep.subr.mxu0 0.0
  %833 = vmatpush2.msra.mxu0 0.0
  %834 = vmatprep.subr.mxu0 0.0
  %835 = vmatpush2.msra.mxu0 0.0
  %836 = vmatprep.subr.mxu0 0.0
  %837 = vmatpush2.msra.mxu0 0.0
  %838 = vmatprep.mubr.f32.mxu0 0.0
  %v839 = vand.u32 %v755, 4294901760
  %v840 = vsub.f32 %v755, %v839
  %v841 = vand.u32 %v840, 4294901760
  %v842 = vsub.f32 %v840, %v841
  %v843 = vand.u32 %v842, 4294901760
  %844 = vmatmul.mubr.f32.gmra.mxu0 %v843
  %v845 = vpop.f32.mrf.mxu0
  %v846 = vadd.f32 0.0, %v845
  %v847 = vpop.f32.mrf.mxu0
  %848 = vdwg.mxu0
  %849 = vmatprep.subr.mxu0 0.0
  %v850 = vand.u32 %v33, 4294901760
  %v851 = vsub.f32 %v33, %v850
  %v852 = vand.u32 %v851, 4294901760
  %v853 = vsub.f32 %v851, %v852
  %v854 = vand.u32 %v853, 4294901760
  %855 = vmatpush1.msra.mxu0 %v854
  %856 = vmatprep.subr.mxu0 0.0
  %v857 = vand.u32 %v32, 4294901760
  %v858 = vsub.f32 %v32, %v857
  %v859 = vand.u32 %v858, 4294901760
  %v860 = vsub.f32 %v858, %v859
  %v861 = vand.u32 %v860, 4294901760
  %862 = vmatpush1.msra.mxu0 %v861
  %863 = vmatprep.subr.mxu0 0.0
  %v864 = vand.u32 %v31, 4294901760
  %v865 = vsub.f32 %v31, %v864
  %v866 = vand.u32 %v865, 4294901760
  %v867 = vsub.f32 %v865, %v866
  %v868 = vand.u32 %v867, 4294901760
  %869 = vmatpush1.msra.mxu0 %v868
  %870 = vmatprep.subr.mxu0 0.0
  %v871 = vand.u32 %v30, 4294901760
  %v872 = vsub.f32 %v30, %v871
  %v873 = vand.u32 %v872, 4294901760
  %v874 = vsub.f32 %v872, %v873
  %v875 = vand.u32 %v874, 4294901760
  %876 = vmatpush1.msra.mxu0 %v875
  %877 = vmatprep.subr.mxu0 0.0
  %v878 = vand.u32 %v29, 4294901760
  %v879 = vsub.f32 %v29, %v878
  %v880 = vand.u32 %v879, 4294901760
  %v881 = vsub.f32 %v879, %v880
  %v882 = vand.u32 %v881, 4294901760
  %883 = vmatpush1.msra.mxu0 %v882
  %884 = vmatprep.subr.mxu0 0.0
  %v885 = vand.u32 %v28, 4294901760
  %v886 = vsub.f32 %v28, %v885
  %v887 = vand.u32 %v886, 4294901760
  %v888 = vsub.f32 %v886, %v887
  %v889 = vand.u32 %v888, 4294901760
  %890 = vmatpush1.msra.mxu0 %v889
  %891 = vmatprep.subr.mxu0 0.0
  %v892 = vand.u32 %v27, 4294901760
  %v893 = vsub.f32 %v27, %v892
  %v894 = vand.u32 %v893, 4294901760
  %v895 = vsub.f32 %v893, %v894
  %v896 = vand.u32 %v895, 4294901760
  %897 = vmatpush1.msra.mxu0 %v896
  %898 = vmatprep.subr.mxu0 0.0
  %v899 = vand.u32 %v26, 4294901760
  %v900 = vsub.f32 %v26, %v899
  %v901 = vand.u32 %v900, 4294901760
  %v902 = vsub.f32 %v900, %v901
  %v903 = vand.u32 %v902, 4294901760
  %904 = vmatpush1.msra.mxu0 %v903
  %905 = vmatprep.subr.mxu0 0.0
  %v906 = vand.u32 %v25, 4294901760
  %v907 = vsub.f32 %v25, %v906
  %v908 = vand.u32 %v907, 4294901760
  %v909 = vsub.f32 %v907, %v908
  %v910 = vand.u32 %v909, 4294901760
  %911 = vmatpush1.msra.mxu0 %v910
  %912 = vmatprep.subr.mxu0 0.0
  %v913 = vand.u32 %v24, 4294901760
  %v914 = vsub.f32 %v24, %v913
  %v915 = vand.u32 %v914, 4294901760
  %v916 = vsub.f32 %v914, %v915
  %v917 = vand.u32 %v916, 4294901760
  %918 = vmatpush1.msra.mxu0 %v917
  %919 = vmatprep.subr.mxu0 0.0
  %v920 = vand.u32 %v23, 4294901760
  %v921 = vsub.f32 %v23, %v920
  %v922 = vand.u32 %v921, 4294901760
  %v923 = vsub.f32 %v921, %v922
  %v924 = vand.u32 %v923, 4294901760
  %925 = vmatpush1.msra.mxu0 %v924
  %926 = vmatprep.subr.mxu0 0.0
  %v927 = vand.u32 %v22, 4294901760
  %v928 = vsub.f32 %v22, %v927
  %v929 = vand.u32 %v928, 4294901760
  %v930 = vsub.f32 %v928, %v929
  %v931 = vand.u32 %v930, 4294901760
  %932 = vmatpush1.msra.mxu0 %v931
  %933 = vmatprep.subr.mxu0 0.0
  %v934 = vand.u32 %v21, 4294901760
  %v935 = vsub.f32 %v21, %v934
  %v936 = vand.u32 %v935, 4294901760
  %v937 = vsub.f32 %v935, %v936
  %v938 = vand.u32 %v937, 4294901760
  %939 = vmatpush1.msra.mxu0 %v938
  %940 = vmatprep.subr.mxu0 0.0
  %v941 = vand.u32 %v20, 4294901760
  %v942 = vsub.f32 %v20, %v941
  %v943 = vand.u32 %v942, 4294901760
  %v944 = vsub.f32 %v942, %v943
  %v945 = vand.u32 %v944, 4294901760
  %946 = vmatpush1.msra.mxu0 %v945
  %947 = vmatprep.subr.mxu0 0.0
  %v948 = vand.u32 %v19, 4294901760
  %v949 = vsub.f32 %v19, %v948
  %v950 = vand.u32 %v949, 4294901760
  %v951 = vsub.f32 %v949, %v950
  %v952 = vand.u32 %v951, 4294901760
  %953 = vmatpush1.msra.mxu0 %v952
  %954 = vmatprep.subr.mxu0 0.0
  %v955 = vand.u32 %v18, 4294901760
  %v956 = vsub.f32 %v18, %v955
  %v957 = vand.u32 %v956, 4294901760
  %v958 = vsub.f32 %v956, %v957
  %v959 = vand.u32 %v958, 4294901760
  %960 = vmatpush1.msra.mxu0 %v959
  %961 = vmatprep.subr.mxu0 0.0
  %962 = vmatpush2.msra.mxu0 0.0
  %963 = vmatprep.subr.mxu0 0.0
  %964 = vmatpush2.msra.mxu0 0.0
  %965 = vmatprep.subr.mxu0 0.0
  %966 = vmatpush2.msra.mxu0 0.0
  %967 = vmatprep.subr.mxu0 0.0
  %968 = vmatpush2.msra.mxu0 0.0
  %969 = vmatprep.subr.mxu0 0.0
  %970 = vmatpush2.msra.mxu0 0.0
  %971 = vmatprep.subr.mxu0 0.0
  %972 = vmatpush2.msra.mxu0 0.0
  %973 = vmatprep.subr.mxu0 0.0
  %974 = vmatpush2.msra.mxu0 0.0
  %975 = vmatprep.subr.mxu0 0.0
  %976 = vmatpush2.msra.mxu0 0.0
  %977 = vmatprep.subr.mxu0 0.0
  %978 = vmatpush2.msra.mxu0 0.0
  %979 = vmatprep.subr.mxu0 0.0
  %980 = vmatpush2.msra.mxu0 0.0
  %981 = vmatprep.subr.mxu0 0.0
  %982 = vmatpush2.msra.mxu0 0.0
  %983 = vmatprep.subr.mxu0 0.0
  %984 = vmatpush2.msra.mxu0 0.0
  %985 = vmatprep.subr.mxu0 0.0
  %986 = vmatpush2.msra.mxu0 0.0
  %987 = vmatprep.subr.mxu0 0.0
  %988 = vmatpush2.msra.mxu0 0.0
  %989 = vmatprep.subr.mxu0 0.0
  %990 = vmatpush2.msra.mxu0 0.0
  %991 = vmatprep.subr.mxu0 0.0
  %992 = vmatpush2.msra.mxu0 0.0
  %993 = vmatprep.mubr.f32.mxu0 0.0
  %v994 = vand.u32 %v755, 4294901760
  %995 = vmatmul.mubr.f32.gmra.mxu0 %v994
  %v996 = vpop.f32.mrf.mxu0
  %v997 = vadd.f32 %v846, %v996
  %v998 = vpop.f32.mrf.mxu0
  %999 = vdwg.mxu0
  %1000 = vmatprep.subr.mxu0 0.0
  %v1001 = vand.u32 %v33, 4294901760
  %v1002 = vsub.f32 %v33, %v1001
  %1003 = vmatpush1.msra.mxu0 %v1002
  %1004 = vmatprep.subr.mxu0 0.0
  %v1005 = vand.u32 %v32, 4294901760
  %v1006 = vsub.f32 %v32, %v1005
  %1007 = vmatpush1.msra.mxu0 %v1006
  %1008 = vmatprep.subr.mxu0 0.0
  %v1009 = vand.u32 %v31, 4294901760
  %v1010 = vsub.f32 %v31, %v1009
  %1011 = vmatpush1.msra.mxu0 %v1010
  %1012 = vmatprep.subr.mxu0 0.0
  %v1013 = vand.u32 %v30, 4294901760
  %v1014 = vsub.f32 %v30, %v1013
  %1015 = vmatpush1.msra.mxu0 %v1014
  %1016 = vmatprep.subr.mxu0 0.0
  %v1017 = vand.u32 %v29, 4294901760
  %v1018 = vsub.f32 %v29, %v1017
  %1019 = vmatpush1.msra.mxu0 %v1018
  %1020 = vmatprep.subr.mxu0 0.0
  %v1021 = vand.u32 %v28, 4294901760
  %v1022 = vsub.f32 %v28, %v1021
  %1023 = vmatpush1.msra.mxu0 %v1022
  %1024 = vmatprep.subr.mxu0 0.0
  %v1025 = vand.u32 %v27, 4294901760
  %v1026 = vsub.f32 %v27, %v1025
  %1027 = vmatpush1.msra.mxu0 %v1026
  %1028 = vmatprep.subr.mxu0 0.0
  %v1029 = vand.u32 %v26, 4294901760
  %v1030 = vsub.f32 %v26, %v1029
  %1031 = vmatpush1.msra.mxu0 %v1030
  %1032 = vmatprep.subr.mxu0 0.0
  %v1033 = vand.u32 %v25, 4294901760
  %v1034 = vsub.f32 %v25, %v1033
  %1035 = vmatpush1.msra.mxu0 %v1034
  %1036 = vmatprep.subr.mxu0 0.0
  %v1037 = vand.u32 %v24, 4294901760
  %v1038 = vsub.f32 %v24, %v1037
  %1039 = vmatpush1.msra.mxu0 %v1038
  %1040 = vmatprep.subr.mxu0 0.0
  %v1041 = vand.u32 %v23, 4294901760
  %v1042 = vsub.f32 %v23, %v1041
  %1043 = vmatpush1.msra.mxu0 %v1042
  %1044 = vmatprep.subr.mxu0 0.0
  %v1045 = vand.u32 %v22, 4294901760
  %v1046 = vsub.f32 %v22, %v1045
  %1047 = vmatpush1.msra.mxu0 %v1046
  %1048 = vmatprep.subr.mxu0 0.0
  %v1049 = vand.u32 %v21, 4294901760
  %v1050 = vsub.f32 %v21, %v1049
  %1051 = vmatpush1.msra.mxu0 %v1050
  %1052 = vmatprep.subr.mxu0 0.0
  %v1053 = vand.u32 %v20, 4294901760
  %v1054 = vsub.f32 %v20, %v1053
  %1055 = vmatpush1.msra.mxu0 %v1054
  %1056 = vmatprep.subr.mxu0 0.0
  %v1057 = vand.u32 %v19, 4294901760
  %v1058 = vsub.f32 %v19, %v1057
  %1059 = vmatpush1.msra.mxu0 %v1058
  %1060 = vmatprep.subr.mxu0 0.0
  %v1061 = vand.u32 %v18, 4294901760
  %v1062 = vsub.f32 %v18, %v1061
  %1063 = vmatpush1.msra.mxu0 %v1062
  %1064 = vmatprep.subr.mxu0 0.0
  %1065 = vmatpush2.msra.mxu0 0.0
  %1066 = vmatprep.subr.mxu0 0.0
  %1067 = vmatpush2.msra.mxu0 0.0
  %1068 = vmatprep.subr.mxu0 0.0
  %1069 = vmatpush2.msra.mxu0 0.0
  %1070 = vmatprep.subr.mxu0 0.0
  %1071 = vmatpush2.msra.mxu0 0.0
  %1072 = vmatprep.subr.mxu0 0.0
  %1073 = vmatpush2.msra.mxu0 0.0
  %1074 = vmatprep.subr.mxu0 0.0
  %1075 = vmatpush2.msra.mxu0 0.0
  %1076 = vmatprep.subr.mxu0 0.0
  %1077 = vmatpush2.msra.mxu0 0.0
  %1078 = vmatprep.subr.mxu0 0.0
  %1079 = vmatpush2.msra.mxu0 0.0
  %1080 = vmatprep.subr.mxu0 0.0
  %1081 = vmatpush2.msra.mxu0 0.0
  %1082 = vmatprep.subr.mxu0 0.0
  %1083 = vmatpush2.msra.mxu0 0.0
  %1084 = vmatprep.subr.mxu0 0.0
  %1085 = vmatpush2.msra.mxu0 0.0
  %1086 = vmatprep.subr.mxu0 0.0
  %1087 = vmatpush2.msra.mxu0 0.0
  %1088 = vmatprep.subr.mxu0 0.0
  %1089 = vmatpush2.msra.mxu0 0.0
  %1090 = vmatprep.subr.mxu0 0.0
  %1091 = vmatpush2.msra.mxu0 0.0
  %1092 = vmatprep.subr.mxu0 0.0
  %1093 = vmatpush2.msra.mxu0 0.0
  %1094 = vmatprep.subr.mxu0 0.0
  %1095 = vmatpush2.msra.mxu0 0.0
  %1096 = vmatprep.mubr.f32.mxu0 0.0
  %v1097 = vand.u32 %v755, 4294901760
  %v1098 = vsub.f32 %v755, %v1097
  %1099 = vmatmul.mubr.f32.gmra.mxu0 %v1098
  %v1100 = vpop.f32.mrf.mxu0
  %v1101 = vadd.f32 %v997, %v1100
  %v1102 = vpop.f32.mrf.mxu0
  %1103 = vdwg.mxu0
  %1104 = vmatprep.subr.mxu0 0.0
  %v1105 = vand.u32 %v33, 4294901760
  %1106 = vmatpush1.msra.mxu0 %v1105
  %1107 = vmatprep.subr.mxu0 0.0
  %v1108 = vand.u32 %v32, 4294901760
  %1109 = vmatpush1.msra.mxu0 %v1108
  %1110 = vmatprep.subr.mxu0 0.0
  %v1111 = vand.u32 %v31, 4294901760
  %1112 = vmatpush1.msra.mxu0 %v1111
  %1113 = vmatprep.subr.mxu0 0.0
  %v1114 = vand.u32 %v30, 4294901760
  %1115 = vmatpush1.msra.mxu0 %v1114
  %1116 = vmatprep.subr.mxu0 0.0
  %v1117 = vand.u32 %v29, 4294901760
  %1118 = vmatpush1.msra.mxu0 %v1117
  %1119 = vmatprep.subr.mxu0 0.0
  %v1120 = vand.u32 %v28, 4294901760
  %1121 = vmatpush1.msra.mxu0 %v1120
  %1122 = vmatprep.subr.mxu0 0.0
  %v1123 = vand.u32 %v27, 4294901760
  %1124 = vmatpush1.msra.mxu0 %v1123
  %1125 = vmatprep.subr.mxu0 0.0
  %v1126 = vand.u32 %v26, 4294901760
  %1127 = vmatpush1.msra.mxu0 %v1126
  %1128 = vmatprep.subr.mxu0 0.0
  %v1129 = vand.u32 %v25, 4294901760
  %1130 = vmatpush1.msra.mxu0 %v1129
  %1131 = vmatprep.subr.mxu0 0.0
  %v1132 = vand.u32 %v24, 4294901760
  %1133 = vmatpush1.msra.mxu0 %v1132
  %1134 = vmatprep.subr.mxu0 0.0
  %v1135 = vand.u32 %v23, 4294901760
  %1136 = vmatpush1.msra.mxu0 %v1135
  %1137 = vmatprep.subr.mxu0 0.0
  %v1138 = vand.u32 %v22, 4294901760
  %1139 = vmatpush1.msra.mxu0 %v1138
  %1140 = vmatprep.subr.mxu0 0.0
  %v1141 = vand.u32 %v21, 4294901760
  %1142 = vmatpush1.msra.mxu0 %v1141
  %1143 = vmatprep.subr.mxu0 0.0
  %v1144 = vand.u32 %v20, 4294901760
  %1145 = vmatpush1.msra.mxu0 %v1144
  %1146 = vmatprep.subr.mxu0 0.0
  %v1147 = vand.u32 %v19, 4294901760
  %1148 = vmatpush1.msra.mxu0 %v1147
  %1149 = vmatprep.subr.mxu0 0.0
  %v1150 = vand.u32 %v18, 4294901760
  %1151 = vmatpush1.msra.mxu0 %v1150
  %1152 = vmatprep.subr.mxu0 0.0
  %1153 = vmatpush2.msra.mxu0 0.0
  %1154 = vmatprep.subr.mxu0 0.0
  %1155 = vmatpush2.msra.mxu0 0.0
  %1156 = vmatprep.subr.mxu0 0.0
  %1157 = vmatpush2.msra.mxu0 0.0
  %1158 = vmatprep.subr.mxu0 0.0
  %1159 = vmatpush2.msra.mxu0 0.0
  %1160 = vmatprep.subr.mxu0 0.0
  %1161 = vmatpush2.msra.mxu0 0.0
  %1162 = vmatprep.subr.mxu0 0.0
  %1163 = vmatpush2.msra.mxu0 0.0
  %1164 = vmatprep.subr.mxu0 0.0
  %1165 = vmatpush2.msra.mxu0 0.0
  %1166 = vmatprep.subr.mxu0 0.0
  %1167 = vmatpush2.msra.mxu0 0.0
  %1168 = vmatprep.subr.mxu0 0.0
  %1169 = vmatpush2.msra.mxu0 0.0
  %1170 = vmatprep.subr.mxu0 0.0
  %1171 = vmatpush2.msra.mxu0 0.0
  %1172 = vmatprep.subr.mxu0 0.0
  %1173 = vmatpush2.msra.mxu0 0.0
  %1174 = vmatprep.subr.mxu0 0.0
  %1175 = vmatpush2.msra.mxu0 0.0
  %1176 = vmatprep.subr.mxu0 0.0
  %1177 = vmatpush2.msra.mxu0 0.0
  %1178 = vmatprep.subr.mxu0 0.0
  %1179 = vmatpush2.msra.mxu0 0.0
  %1180 = vmatprep.subr.mxu0 0.0
  %1181 = vmatpush2.msra.mxu0 0.0
  %1182 = vmatprep.subr.mxu0 0.0
  %1183 = vmatpush2.msra.mxu0 0.0
  %1184 = vmatprep.mubr.f32.mxu0 0.0
  %v1185 = vand.u32 %v755, 4294901760
  %v1186 = vsub.f32 %v755, %v1185
  %v1187 = vand.u32 %v1186, 4294901760
  %1188 = vmatmul.mubr.f32.gmra.mxu0 %v1187
  %v1189 = vpop.f32.mrf.mxu0
  %v1190 = vadd.f32 %v1101, %v1189
  %v1191 = vpop.f32.mrf.mxu0
  %1192 = vdwg.mxu0
  %1193 = vmatprep.subr.mxu0 0.0
  %v1194 = vand.u32 %v33, 4294901760
  %v1195 = vsub.f32 %v33, %v1194
  %v1196 = vand.u32 %v1195, 4294901760
  %1197 = vmatpush1.msra.mxu0 %v1196
  %1198 = vmatprep.subr.mxu0 0.0
  %v1199 = vand.u32 %v32, 4294901760
  %v1200 = vsub.f32 %v32, %v1199
  %v1201 = vand.u32 %v1200, 4294901760
  %1202 = vmatpush1.msra.mxu0 %v1201
  %1203 = vmatprep.subr.mxu0 0.0
  %v1204 = vand.u32 %v31, 4294901760
  %v1205 = vsub.f32 %v31, %v1204
  %v1206 = vand.u32 %v1205, 4294901760
  %1207 = vmatpush1.msra.mxu0 %v1206
  %1208 = vmatprep.subr.mxu0 0.0
  %v1209 = vand.u32 %v30, 4294901760
  %v1210 = vsub.f32 %v30, %v1209
  %v1211 = vand.u32 %v1210, 4294901760
  %1212 = vmatpush1.msra.mxu0 %v1211
  %1213 = vmatprep.subr.mxu0 0.0
  %v1214 = vand.u32 %v29, 4294901760
  %v1215 = vsub.f32 %v29, %v1214
  %v1216 = vand.u32 %v1215, 4294901760
  %1217 = vmatpush1.msra.mxu0 %v1216
  %1218 = vmatprep.subr.mxu0 0.0
  %v1219 = vand.u32 %v28, 4294901760
  %v1220 = vsub.f32 %v28, %v1219
  %v1221 = vand.u32 %v1220, 4294901760
  %1222 = vmatpush1.msra.mxu0 %v1221
  %1223 = vmatprep.subr.mxu0 0.0
  %v1224 = vand.u32 %v27, 4294901760
  %v1225 = vsub.f32 %v27, %v1224
  %v1226 = vand.u32 %v1225, 4294901760
  %1227 = vmatpush1.msra.mxu0 %v1226
  %1228 = vmatprep.subr.mxu0 0.0
  %v1229 = vand.u32 %v26, 4294901760
  %v1230 = vsub.f32 %v26, %v1229
  %v1231 = vand.u32 %v1230, 4294901760
  %1232 = vmatpush1.msra.mxu0 %v1231
  %1233 = vmatprep.subr.mxu0 0.0
  %v1234 = vand.u32 %v25, 4294901760
  %v1235 = vsub.f32 %v25, %v1234
  %v1236 = vand.u32 %v1235, 4294901760
  %1237 = vmatpush1.msra.mxu0 %v1236
  %1238 = vmatprep.subr.mxu0 0.0
  %v1239 = vand.u32 %v24, 4294901760
  %v1240 = vsub.f32 %v24, %v1239
  %v1241 = vand.u32 %v1240, 4294901760
  %1242 = vmatpush1.msra.mxu0 %v1241
  %1243 = vmatprep.subr.mxu0 0.0
  %v1244 = vand.u32 %v23, 4294901760
  %v1245 = vsub.f32 %v23, %v1244
  %v1246 = vand.u32 %v1245, 4294901760
  %1247 = vmatpush1.msra.mxu0 %v1246
  %1248 = vmatprep.subr.mxu0 0.0
  %v1249 = vand.u32 %v22, 4294901760
  %v1250 = vsub.f32 %v22, %v1249
  %v1251 = vand.u32 %v1250, 4294901760
  %1252 = vmatpush1.msra.mxu0 %v1251
  %1253 = vmatprep.subr.mxu0 0.0
  %v1254 = vand.u32 %v21, 4294901760
  %v1255 = vsub.f32 %v21, %v1254
  %v1256 = vand.u32 %v1255, 4294901760
  %1257 = vmatpush1.msra.mxu0 %v1256
  %1258 = vmatprep.subr.mxu0 0.0
  %v1259 = vand.u32 %v20, 4294901760
  %v1260 = vsub.f32 %v20, %v1259
  %v1261 = vand.u32 %v1260, 4294901760
  %1262 = vmatpush1.msra.mxu0 %v1261
  %1263 = vmatprep.subr.mxu0 0.0
  %v1264 = vand.u32 %v19, 4294901760
  %v1265 = vsub.f32 %v19, %v1264
  %v1266 = vand.u32 %v1265, 4294901760
  %1267 = vmatpush1.msra.mxu0 %v1266
  %1268 = vmatprep.subr.mxu0 0.0
  %v1269 = vand.u32 %v18, 4294901760
  %v1270 = vsub.f32 %v18, %v1269
  %v1271 = vand.u32 %v1270, 4294901760
  %1272 = vmatpush1.msra.mxu0 %v1271
  %1273 = vmatprep.subr.mxu0 0.0
  %1274 = vmatpush2.msra.mxu0 0.0
  %1275 = vmatprep.subr.mxu0 0.0
  %1276 = vmatpush2.msra.mxu0 0.0
  %1277 = vmatprep.subr.mxu0 0.0
  %1278 = vmatpush2.msra.mxu0 0.0
  %1279 = vmatprep.subr.mxu0 0.0
  %1280 = vmatpush2.msra.mxu0 0.0
  %1281 = vmatprep.subr.mxu0 0.0
  %1282 = vmatpush2.msra.mxu0 0.0
  %1283 = vmatprep.subr.mxu0 0.0
  %1284 = vmatpush2.msra.mxu0 0.0
  %1285 = vmatprep.subr.mxu0 0.0
  %1286 = vmatpush2.msra.mxu0 0.0
  %1287 = vmatprep.subr.mxu0 0.0
  %1288 = vmatpush2.msra.mxu0 0.0
  %1289 = vmatprep.subr.mxu0 0.0
  %1290 = vmatpush2.msra.mxu0 0.0
  %1291 = vmatprep.subr.mxu0 0.0
  %1292 = vmatpush2.msra.mxu0 0.0
  %1293 = vmatprep.subr.mxu0 0.0
  %1294 = vmatpush2.msra.mxu0 0.0
  %1295 = vmatprep.subr.mxu0 0.0
  %1296 = vmatpush2.msra.mxu0 0.0
  %1297 = vmatprep.subr.mxu0 0.0
  %1298 = vmatpush2.msra.mxu0 0.0
  %1299 = vmatprep.subr.mxu0 0.0
  %1300 = vmatpush2.msra.mxu0 0.0
  %1301 = vmatprep.subr.mxu0 0.0
  %1302 = vmatpush2.msra.mxu0 0.0
  %1303 = vmatprep.subr.mxu0 0.0
  %1304 = vmatpush2.msra.mxu0 0.0
  %1305 = vmatprep.mubr.f32.mxu0 0.0
  %v1306 = vand.u32 %v755, 4294901760
  %1307 = vmatmul.mubr.f32.gmra.mxu0 %v1306
  %v1308 = vpop.f32.mrf.mxu0
  %v1309 = vadd.f32 %v1190, %v1308
  %v1310 = vpop.f32.mrf.mxu0
  %1311 = vdwg.mxu0
  %1312 = vmatprep.subr.mxu0 0.0
  %v1313 = vand.u32 %v33, 4294901760
  %1314 = vmatpush1.msra.mxu0 %v1313
  %1315 = vmatprep.subr.mxu0 0.0
  %v1316 = vand.u32 %v32, 4294901760
  %1317 = vmatpush1.msra.mxu0 %v1316
  %1318 = vmatprep.subr.mxu0 0.0
  %v1319 = vand.u32 %v31, 4294901760
  %1320 = vmatpush1.msra.mxu0 %v1319
  %1321 = vmatprep.subr.mxu0 0.0
  %v1322 = vand.u32 %v30, 4294901760
  %1323 = vmatpush1.msra.mxu0 %v1322
  %1324 = vmatprep.subr.mxu0 0.0
  %v1325 = vand.u32 %v29, 4294901760
  %1326 = vmatpush1.msra.mxu0 %v1325
  %1327 = vmatprep.subr.mxu0 0.0
  %v1328 = vand.u32 %v28, 4294901760
  %1329 = vmatpush1.msra.mxu0 %v1328
  %1330 = vmatprep.subr.mxu0 0.0
  %v1331 = vand.u32 %v27, 4294901760
  %1332 = vmatpush1.msra.mxu0 %v1331
  %1333 = vmatprep.subr.mxu0 0.0
  %v1334 = vand.u32 %v26, 4294901760
  %1335 = vmatpush1.msra.mxu0 %v1334
  %1336 = vmatprep.subr.mxu0 0.0
  %v1337 = vand.u32 %v25, 4294901760
  %1338 = vmatpush1.msra.mxu0 %v1337
  %1339 = vmatprep.subr.mxu0 0.0
  %v1340 = vand.u32 %v24, 4294901760
  %1341 = vmatpush1.msra.mxu0 %v1340
  %1342 = vmatprep.subr.mxu0 0.0
  %v1343 = vand.u32 %v23, 4294901760
  %1344 = vmatpush1.msra.mxu0 %v1343
  %1345 = vmatprep.subr.mxu0 0.0
  %v1346 = vand.u32 %v22, 4294901760
  %1347 = vmatpush1.msra.mxu0 %v1346
  %1348 = vmatprep.subr.mxu0 0.0
  %v1349 = vand.u32 %v21, 4294901760
  %1350 = vmatpush1.msra.mxu0 %v1349
  %1351 = vmatprep.subr.mxu0 0.0
  %v1352 = vand.u32 %v20, 4294901760
  %1353 = vmatpush1.msra.mxu0 %v1352
  %1354 = vmatprep.subr.mxu0 0.0
  %v1355 = vand.u32 %v19, 4294901760
  %1356 = vmatpush1.msra.mxu0 %v1355
  %1357 = vmatprep.subr.mxu0 0.0
  %v1358 = vand.u32 %v18, 4294901760
  %1359 = vmatpush1.msra.mxu0 %v1358
  %1360 = vmatprep.subr.mxu0 0.0
  %1361 = vmatpush2.msra.mxu0 0.0
  %1362 = vmatprep.subr.mxu0 0.0
  %1363 = vmatpush2.msra.mxu0 0.0
  %1364 = vmatprep.subr.mxu0 0.0
  %1365 = vmatpush2.msra.mxu0 0.0
  %1366 = vmatprep.subr.mxu0 0.0
  %1367 = vmatpush2.msra.mxu0 0.0
  %1368 = vmatprep.subr.mxu0 0.0
  %1369 = vmatpush2.msra.mxu0 0.0
  %1370 = vmatprep.subr.mxu0 0.0
  %1371 = vmatpush2.msra.mxu0 0.0
  %1372 = vmatprep.subr.mxu0 0.0
  %1373 = vmatpush2.msra.mxu0 0.0
  %1374 = vmatprep.subr.mxu0 0.0
  %1375 = vmatpush2.msra.mxu0 0.0
  %1376 = vmatprep.subr.mxu0 0.0
  %1377 = vmatpush2.msra.mxu0 0.0
  %1378 = vmatprep.subr.mxu0 0.0
  %1379 = vmatpush2.msra.mxu0 0.0
  %1380 = vmatprep.subr.mxu0 0.0
  %1381 = vmatpush2.msra.mxu0 0.0
  %1382 = vmatprep.subr.mxu0 0.0
  %1383 = vmatpush2.msra.mxu0 0.0
  %1384 = vmatprep.subr.mxu0 0.0
  %1385 = vmatpush2.msra.mxu0 0.0
  %1386 = vmatprep.subr.mxu0 0.0
  %1387 = vmatpush2.msra.mxu0 0.0
  %1388 = vmatprep.subr.mxu0 0.0
  %1389 = vmatpush2.msra.mxu0 0.0
  %1390 = vmatprep.subr.mxu0 0.0
  %1391 = vmatpush2.msra.mxu0 0.0
  %1392 = vmatprep.mubr.f32.mxu0 0.0
  %v1393 = vand.u32 %v755, 4294901760
  %1394 = vmatmul.mubr.f32.gmra.mxu0 %v1393
  %v1395 = vpop.f32.mrf.mxu0
  %v1396 = vadd.f32 %v1309, %v1395
  %v1397 = vpop.f32.mrf.mxu0
  %1398 = vdwg.mxu0
  %v1400 = vrot.slane %v1396, 3
  %1401 = vrot.lane.b32.xlu0 %v1400, 125
  %v1402 = vpop.permute.xlu0 %1401
  %v1404 = vadd.f32 %v1396, %v1402
  %v1408 = vlaneseq
  %v1409 = vshrl.u32 %v1408, 7
  %v1410 = vsub.s32 0, %v1409
  %v1411 = vrot.slane %v34, %v1410
  %v1412 = vlaneseq
  %v1413 = vshrl.u32 %v1412, 7
  %v1414 = vsub.s32 0, %v1413
  %v1415 = vrot.slane %v35, %v1414
  %v1416 = vlaneseq
  %v1417 = vshrl.u32 %v1416, 7
  %v1418 = vsub.s32 0, %v1417
  %v1419 = vrot.slane %v36, %v1418
  %1420 = vset.pattern.permute.xlu0 0
  %1421 = vperm.xlu0 %1420, %v1411
  %v1422 = vpop.permute.xlu0 %1421
  %1424 = vset.pattern.permute.xlu0 0
  %1425 = vperm.xlu0 %1424, %v1415
  %v1426 = vpop.permute.xlu0 %1425
  %1428 = vset.pattern.permute.xlu0 0
  %1429 = vperm.xlu0 %1428, %v1419
  %v1430 = vpop.permute.xlu0 %1429
  %v1432 = vadd.f32 %v1404, %v1422
  %v1433 = vadd.f32 %v1404, %v1426
  %v1434 = vadd.f32 %v1404, %v1430
  %vm1435 = vcmask 18432
  %1436 = vst.msk [vmem:[%s4] sm:$0x7] %vm1435, %v1432
  %1437 = vst.msk [vmem:[%s4 + $0x4] sm:$0x7] %vm1435, %v1433
  %1438 = vst.msk [vmem:[%s4 + $0x8] sm:$0x7] %vm1435, %v1434
  %s1439 = scalar_lea.vmem %s0, 384
  %v1440 = vld [vmem:[%s1439] sm:$0xff]
  %v1441 = vld [vmem:[%s1439 + $0x8] sm:$0xff]
  %v1442 = vld [vmem:[%s1439 + $0x10] sm:$0xff]
  %v1443 = vld [vmem:[%s1439 + $0x18] sm:$0xff]
  %v1444 = vld [vmem:[%s1439 + $0x20] sm:$0xff]
  %v1445 = vld [vmem:[%s1439 + $0x28] sm:$0xff]
  %v1446 = vld [vmem:[%s1439 + $0x30] sm:$0xff]
  %v1447 = vld [vmem:[%s1439 + $0x38] sm:$0xff]
  %v1448 = vld [vmem:[%s1439 + $0x40] sm:$0xff]
  %v1449 = vld [vmem:[%s1439 + $0x48] sm:$0xff]
  %v1450 = vld [vmem:[%s1439 + $0x50] sm:$0xff]
  %v1451 = vld [vmem:[%s1439 + $0x58] sm:$0xff]
  %v1452 = vld [vmem:[%s1439 + $0x60] sm:$0xff]
  %v1453 = vld [vmem:[%s1439 + $0x68] sm:$0xff]
  %v1454 = vld [vmem:[%s1439 + $0x70] sm:$0xff]
  %v1455 = vld [vmem:[%s1439 + $0x78] sm:$0xff]
  %v1456 = vld [vmem:[%s1439 + $0x80] sm:$0xff]
  %v1457 = vld [vmem:[%s1439 + $0x88] sm:$0xff]
  %v1458 = vld [vmem:[%s1439 + $0x90] sm:$0xff]
  %v1459 = vld [vmem:[%s1439 + $0x98] sm:$0xff]
  %v1460 = vld [vmem:[%s1439 + $0xa0] sm:$0xff]
  %v1461 = vld [vmem:[%s1439 + $0xa8] sm:$0xff]
  %v1462 = vld [vmem:[%s1439 + $0xb0] sm:$0xff]
  %v1463 = vld [vmem:[%s1439 + $0xb8] sm:$0xff]
  %v1464 = vld [vmem:[%s1439 + $0xc0] sm:$0xff]
  %v1465 = vld [vmem:[%s1439 + $0xc8] sm:$0xff]
  %v1466 = vld [vmem:[%s1439 + $0xd0] sm:$0xff]
  %v1467 = vld [vmem:[%s1439 + $0xd8] sm:$0xff]
  %v1468 = vld [vmem:[%s1439 + $0xe0] sm:$0xff]
  %v1469 = vld [vmem:[%s1439 + $0xe8] sm:$0xff]
  %v1470 = vld [vmem:[%s1439 + $0xf0] sm:$0xff]
  %v1471 = vld [vmem:[%s1439 + $0xf8] sm:$0xff]
  %v1472 = vld [vmem:[%s1439 + $0x100] sm:$0xff]
  %v1473 = vld [vmem:[%s1439 + $0x108] sm:$0xff]
  %v1474 = vld [vmem:[%s1439 + $0x110] sm:$0xff]
  %v1475 = vld [vmem:[%s1439 + $0x118] sm:$0xff]
  %v1476 = vld [vmem:[%s1439 + $0x120] sm:$0xff]
  %v1477 = vld [vmem:[%s1439 + $0x128] sm:$0xff]
  %v1478 = vld [vmem:[%s1439 + $0x130] sm:$0xff]
  %v1479 = vld [vmem:[%s1439 + $0x138] sm:$0xff]
  %v1480 = vld [vmem:[%s1439 + $0x140] sm:$0xff]
  %v1481 = vld [vmem:[%s1439 + $0x148] sm:$0xff]
  %v1482 = vld [vmem:[%s1439 + $0x150] sm:$0xff]
  %v1483 = vld [vmem:[%s1439 + $0x158] sm:$0xff]
  %v1484 = vld [vmem:[%s1439 + $0x160] sm:$0xff]
  %v1485 = vld [vmem:[%s1439 + $0x168] sm:$0xff]
  %v1486 = vld [vmem:[%s1439 + $0x170] sm:$0xff]
  %v1487 = vld [vmem:[%s1439 + $0x178] sm:$0xff]
  %v1488 = vadd.f32 %v1440, %v1456
  %v1489 = vadd.f32 %v1488, %v1472
  %v1490 = vadd.f32 %v1441, %v1457
  %v1491 = vadd.f32 %v1490, %v1473
  %v1492 = vadd.f32 %v1442, %v1458
  %v1493 = vadd.f32 %v1492, %v1474
  %v1494 = vadd.f32 %v1443, %v1459
  %v1495 = vadd.f32 %v1494, %v1475
  %v1496 = vadd.f32 %v1444, %v1460
  %v1497 = vadd.f32 %v1496, %v1476
  %v1498 = vadd.f32 %v1445, %v1461
  %v1499 = vadd.f32 %v1498, %v1477
  %v1500 = vadd.f32 %v1446, %v1462
  %v1501 = vadd.f32 %v1500, %v1478
  %v1502 = vadd.f32 %v1447, %v1463
  %v1503 = vadd.f32 %v1502, %v1479
  %v1504 = vadd.f32 %v1448, %v1464
  %v1505 = vadd.f32 %v1504, %v1480
  %v1506 = vadd.f32 %v1449, %v1465
  %v1507 = vadd.f32 %v1506, %v1481
  %v1508 = vadd.f32 %v1450, %v1466
  %v1509 = vadd.f32 %v1508, %v1482
  %v1510 = vadd.f32 %v1451, %v1467
  %v1511 = vadd.f32 %v1510, %v1483
  %v1512 = vadd.f32 %v1452, %v1468
  %v1513 = vadd.f32 %v1512, %v1484
  %v1514 = vadd.f32 %v1453, %v1469
  %v1515 = vadd.f32 %v1514, %v1485
  %v1516 = vadd.f32 %v1454, %v1470
  %v1517 = vadd.f32 %v1516, %v1486
  %v1518 = vadd.f32 %v1455, %v1471
  %v1519 = vadd.f32 %v1518, %v1487
  %1520 = vmatprep.subr.mxu0 0.0
  %v1521 = vand.u32 %v1519, 4294901760
  %1522 = vmatpush1.msra.mxu0 %v1521
  %1523 = vmatprep.subr.mxu0 0.0
  %v1524 = vand.u32 %v1517, 4294901760
  %1525 = vmatpush1.msra.mxu0 %v1524
  %1526 = vmatprep.subr.mxu0 0.0
  %v1527 = vand.u32 %v1515, 4294901760
  %1528 = vmatpush1.msra.mxu0 %v1527
  %1529 = vmatprep.subr.mxu0 0.0
  %v1530 = vand.u32 %v1513, 4294901760
  %1531 = vmatpush1.msra.mxu0 %v1530
  %1532 = vmatprep.subr.mxu0 0.0
  %v1533 = vand.u32 %v1511, 4294901760
  %1534 = vmatpush1.msra.mxu0 %v1533
  %1535 = vmatprep.subr.mxu0 0.0
  %v1536 = vand.u32 %v1509, 4294901760
  %1537 = vmatpush1.msra.mxu0 %v1536
  %1538 = vmatprep.subr.mxu0 0.0
  %v1539 = vand.u32 %v1507, 4294901760
  %1540 = vmatpush1.msra.mxu0 %v1539
  %1541 = vmatprep.subr.mxu0 0.0
  %v1542 = vand.u32 %v1505, 4294901760
  %1543 = vmatpush1.msra.mxu0 %v1542
  %1544 = vmatprep.subr.mxu0 0.0
  %v1545 = vand.u32 %v1503, 4294901760
  %1546 = vmatpush1.msra.mxu0 %v1545
  %1547 = vmatprep.subr.mxu0 0.0
  %v1548 = vand.u32 %v1501, 4294901760
  %1549 = vmatpush1.msra.mxu0 %v1548
  %1550 = vmatprep.subr.mxu0 0.0
  %v1551 = vand.u32 %v1499, 4294901760
  %1552 = vmatpush1.msra.mxu0 %v1551
  %1553 = vmatprep.subr.mxu0 0.0
  %v1554 = vand.u32 %v1497, 4294901760
  %1555 = vmatpush1.msra.mxu0 %v1554
  %1556 = vmatprep.subr.mxu0 0.0
  %v1557 = vand.u32 %v1495, 4294901760
  %1558 = vmatpush1.msra.mxu0 %v1557
  %1559 = vmatprep.subr.mxu0 0.0
  %v1560 = vand.u32 %v1493, 4294901760
  %1561 = vmatpush1.msra.mxu0 %v1560
  %1562 = vmatprep.subr.mxu0 0.0
  %v1563 = vand.u32 %v1491, 4294901760
  %1564 = vmatpush1.msra.mxu0 %v1563
  %1565 = vmatprep.subr.mxu0 0.0
  %v1566 = vand.u32 %v1489, 4294901760
  %1567 = vmatpush1.msra.mxu0 %v1566
  %1568 = vmatprep.subr.mxu0 0.0
  %1569 = vmatpush2.msra.mxu0 0.0
  %1570 = vmatprep.subr.mxu0 0.0
  %1571 = vmatpush2.msra.mxu0 0.0
  %1572 = vmatprep.subr.mxu0 0.0
  %1573 = vmatpush2.msra.mxu0 0.0
  %1574 = vmatprep.subr.mxu0 0.0
  %1575 = vmatpush2.msra.mxu0 0.0
  %1576 = vmatprep.subr.mxu0 0.0
  %1577 = vmatpush2.msra.mxu0 0.0
  %1578 = vmatprep.subr.mxu0 0.0
  %1579 = vmatpush2.msra.mxu0 0.0
  %1580 = vmatprep.subr.mxu0 0.0
  %1581 = vmatpush2.msra.mxu0 0.0
  %1582 = vmatprep.subr.mxu0 0.0
  %1583 = vmatpush2.msra.mxu0 0.0
  %1584 = vmatprep.subr.mxu0 0.0
  %1585 = vmatpush2.msra.mxu0 0.0
  %1586 = vmatprep.subr.mxu0 0.0
  %1587 = vmatpush2.msra.mxu0 0.0
  %1588 = vmatprep.subr.mxu0 0.0
  %1589 = vmatpush2.msra.mxu0 0.0
  %1590 = vmatprep.subr.mxu0 0.0
  %1591 = vmatpush2.msra.mxu0 0.0
  %1592 = vmatprep.subr.mxu0 0.0
  %1593 = vmatpush2.msra.mxu0 0.0
  %1594 = vmatprep.subr.mxu0 0.0
  %1595 = vmatpush2.msra.mxu0 0.0
  %1596 = vmatprep.subr.mxu0 0.0
  %1597 = vmatpush2.msra.mxu0 0.0
  %1598 = vmatprep.subr.mxu0 0.0
  %1599 = vmatpush2.msra.mxu0 0.0
  %1600 = vmatprep.mubr.f32.mxu0 0.0
  %v1601 = vand.u32 %v17, 4294901760
  %v1602 = vsub.f32 %v17, %v1601
  %v1603 = vand.u32 %v1602, 4294901760
  %v1604 = vsub.f32 %v1602, %v1603
  %v1605 = vand.u32 %v1604, 4294901760
  %1606 = vmatmul.mubr.f32.gmra.mxu0 %v1605
  %v1607 = vpop.f32.mrf.mxu0
  %v1608 = vadd.f32 0.0, %v1607
  %v1609 = vpop.f32.mrf.mxu0
  %1610 = vdwg.mxu0
  %1611 = vmatprep.subr.mxu0 0.0
  %v1612 = vand.u32 %v1519, 4294901760
  %v1613 = vsub.f32 %v1519, %v1612
  %v1614 = vand.u32 %v1613, 4294901760
  %v1615 = vsub.f32 %v1613, %v1614
  %v1616 = vand.u32 %v1615, 4294901760
  %1617 = vmatpush1.msra.mxu0 %v1616
  %1618 = vmatprep.subr.mxu0 0.0
  %v1619 = vand.u32 %v1517, 4294901760
  %v1620 = vsub.f32 %v1517, %v1619
  %v1621 = vand.u32 %v1620, 4294901760
  %v1622 = vsub.f32 %v1620, %v1621
  %v1623 = vand.u32 %v1622, 4294901760
  %1624 = vmatpush1.msra.mxu0 %v1623
  %1625 = vmatprep.subr.mxu0 0.0
  %v1626 = vand.u32 %v1515, 4294901760
  %v1627 = vsub.f32 %v1515, %v1626
  %v1628 = vand.u32 %v1627, 4294901760
  %v1629 = vsub.f32 %v1627, %v1628
  %v1630 = vand.u32 %v1629, 4294901760
  %1631 = vmatpush1.msra.mxu0 %v1630
  %1632 = vmatprep.subr.mxu0 0.0
  %v1633 = vand.u32 %v1513, 4294901760
  %v1634 = vsub.f32 %v1513, %v1633
  %v1635 = vand.u32 %v1634, 4294901760
  %v1636 = vsub.f32 %v1634, %v1635
  %v1637 = vand.u32 %v1636, 4294901760
  %1638 = vmatpush1.msra.mxu0 %v1637
  %1639 = vmatprep.subr.mxu0 0.0
  %v1640 = vand.u32 %v1511, 4294901760
  %v1641 = vsub.f32 %v1511, %v1640
  %v1642 = vand.u32 %v1641, 4294901760
  %v1643 = vsub.f32 %v1641, %v1642
  %v1644 = vand.u32 %v1643, 4294901760
  %1645 = vmatpush1.msra.mxu0 %v1644
  %1646 = vmatprep.subr.mxu0 0.0
  %v1647 = vand.u32 %v1509, 4294901760
  %v1648 = vsub.f32 %v1509, %v1647
  %v1649 = vand.u32 %v1648, 4294901760
  %v1650 = vsub.f32 %v1648, %v1649
  %v1651 = vand.u32 %v1650, 4294901760
  %1652 = vmatpush1.msra.mxu0 %v1651
  %1653 = vmatprep.subr.mxu0 0.0
  %v1654 = vand.u32 %v1507, 4294901760
  %v1655 = vsub.f32 %v1507, %v1654
  %v1656 = vand.u32 %v1655, 4294901760
  %v1657 = vsub.f32 %v1655, %v1656
  %v1658 = vand.u32 %v1657, 4294901760
  %1659 = vmatpush1.msra.mxu0 %v1658
  %1660 = vmatprep.subr.mxu0 0.0
  %v1661 = vand.u32 %v1505, 4294901760
  %v1662 = vsub.f32 %v1505, %v1661
  %v1663 = vand.u32 %v1662, 4294901760
  %v1664 = vsub.f32 %v1662, %v1663
  %v1665 = vand.u32 %v1664, 4294901760
  %1666 = vmatpush1.msra.mxu0 %v1665
  %1667 = vmatprep.subr.mxu0 0.0
  %v1668 = vand.u32 %v1503, 4294901760
  %v1669 = vsub.f32 %v1503, %v1668
  %v1670 = vand.u32 %v1669, 4294901760
  %v1671 = vsub.f32 %v1669, %v1670
  %v1672 = vand.u32 %v1671, 4294901760
  %1673 = vmatpush1.msra.mxu0 %v1672
  %1674 = vmatprep.subr.mxu0 0.0
  %v1675 = vand.u32 %v1501, 4294901760
  %v1676 = vsub.f32 %v1501, %v1675
  %v1677 = vand.u32 %v1676, 4294901760
  %v1678 = vsub.f32 %v1676, %v1677
  %v1679 = vand.u32 %v1678, 4294901760
  %1680 = vmatpush1.msra.mxu0 %v1679
  %1681 = vmatprep.subr.mxu0 0.0
  %v1682 = vand.u32 %v1499, 4294901760
  %v1683 = vsub.f32 %v1499, %v1682
  %v1684 = vand.u32 %v1683, 4294901760
  %v1685 = vsub.f32 %v1683, %v1684
  %v1686 = vand.u32 %v1685, 4294901760
  %1687 = vmatpush1.msra.mxu0 %v1686
  %1688 = vmatprep.subr.mxu0 0.0
  %v1689 = vand.u32 %v1497, 4294901760
  %v1690 = vsub.f32 %v1497, %v1689
  %v1691 = vand.u32 %v1690, 4294901760
  %v1692 = vsub.f32 %v1690, %v1691
  %v1693 = vand.u32 %v1692, 4294901760
  %1694 = vmatpush1.msra.mxu0 %v1693
  %1695 = vmatprep.subr.mxu0 0.0
  %v1696 = vand.u32 %v1495, 4294901760
  %v1697 = vsub.f32 %v1495, %v1696
  %v1698 = vand.u32 %v1697, 4294901760
  %v1699 = vsub.f32 %v1697, %v1698
  %v1700 = vand.u32 %v1699, 4294901760
  %1701 = vmatpush1.msra.mxu0 %v1700
  %1702 = vmatprep.subr.mxu0 0.0
  %v1703 = vand.u32 %v1493, 4294901760
  %v1704 = vsub.f32 %v1493, %v1703
  %v1705 = vand.u32 %v1704, 4294901760
  %v1706 = vsub.f32 %v1704, %v1705
  %v1707 = vand.u32 %v1706, 4294901760
  %1708 = vmatpush1.msra.mxu0 %v1707
  %1709 = vmatprep.subr.mxu0 0.0
  %v1710 = vand.u32 %v1491, 4294901760
  %v1711 = vsub.f32 %v1491, %v1710
  %v1712 = vand.u32 %v1711, 4294901760
  %v1713 = vsub.f32 %v1711, %v1712
  %v1714 = vand.u32 %v1713, 4294901760
  %1715 = vmatpush1.msra.mxu0 %v1714
  %1716 = vmatprep.subr.mxu0 0.0
  %v1717 = vand.u32 %v1489, 4294901760
  %v1718 = vsub.f32 %v1489, %v1717
  %v1719 = vand.u32 %v1718, 4294901760
  %v1720 = vsub.f32 %v1718, %v1719
  %v1721 = vand.u32 %v1720, 4294901760
  %1722 = vmatpush1.msra.mxu0 %v1721
  %1723 = vmatprep.subr.mxu0 0.0
  %1724 = vmatpush2.msra.mxu0 0.0
  %1725 = vmatprep.subr.mxu0 0.0
  %1726 = vmatpush2.msra.mxu0 0.0
  %1727 = vmatprep.subr.mxu0 0.0
  %1728 = vmatpush2.msra.mxu0 0.0
  %1729 = vmatprep.subr.mxu0 0.0
  %1730 = vmatpush2.msra.mxu0 0.0
  %1731 = vmatprep.subr.mxu0 0.0
  %1732 = vmatpush2.msra.mxu0 0.0
  %1733 = vmatprep.subr.mxu0 0.0
  %1734 = vmatpush2.msra.mxu0 0.0
  %1735 = vmatprep.subr.mxu0 0.0
  %1736 = vmatpush2.msra.mxu0 0.0
  %1737 = vmatprep.subr.mxu0 0.0
  %1738 = vmatpush2.msra.mxu0 0.0
  %1739 = vmatprep.subr.mxu0 0.0
  %1740 = vmatpush2.msra.mxu0 0.0
  %1741 = vmatprep.subr.mxu0 0.0
  %1742 = vmatpush2.msra.mxu0 0.0
  %1743 = vmatprep.subr.mxu0 0.0
  %1744 = vmatpush2.msra.mxu0 0.0
  %1745 = vmatprep.subr.mxu0 0.0
  %1746 = vmatpush2.msra.mxu0 0.0
  %1747 = vmatprep.subr.mxu0 0.0
  %1748 = vmatpush2.msra.mxu0 0.0
  %1749 = vmatprep.subr.mxu0 0.0
  %1750 = vmatpush2.msra.mxu0 0.0
  %1751 = vmatprep.subr.mxu0 0.0
  %1752 = vmatpush2.msra.mxu0 0.0
  %1753 = vmatprep.subr.mxu0 0.0
  %1754 = vmatpush2.msra.mxu0 0.0
  %1755 = vmatprep.mubr.f32.mxu0 0.0
  %v1756 = vand.u32 %v17, 4294901760
  %1757 = vmatmul.mubr.f32.gmra.mxu0 %v1756
  %v1758 = vpop.f32.mrf.mxu0
  %v1759 = vadd.f32 %v1608, %v1758
  %v1760 = vpop.f32.mrf.mxu0
  %1761 = vdwg.mxu0
  %1762 = vmatprep.subr.mxu0 0.0
  %v1763 = vand.u32 %v1519, 4294901760
  %v1764 = vsub.f32 %v1519, %v1763
  %1765 = vmatpush1.msra.mxu0 %v1764
  %1766 = vmatprep.subr.mxu0 0.0
  %v1767 = vand.u32 %v1517, 4294901760
  %v1768 = vsub.f32 %v1517, %v1767
  %1769 = vmatpush1.msra.mxu0 %v1768
  %1770 = vmatprep.subr.mxu0 0.0
  %v1771 = vand.u32 %v1515, 4294901760
  %v1772 = vsub.f32 %v1515, %v1771
  %1773 = vmatpush1.msra.mxu0 %v1772
  %1774 = vmatprep.subr.mxu0 0.0
  %v1775 = vand.u32 %v1513, 4294901760
  %v1776 = vsub.f32 %v1513, %v1775
  %1777 = vmatpush1.msra.mxu0 %v1776
  %1778 = vmatprep.subr.mxu0 0.0
  %v1779 = vand.u32 %v1511, 4294901760
  %v1780 = vsub.f32 %v1511, %v1779
  %1781 = vmatpush1.msra.mxu0 %v1780
  %1782 = vmatprep.subr.mxu0 0.0
  %v1783 = vand.u32 %v1509, 4294901760
  %v1784 = vsub.f32 %v1509, %v1783
  %1785 = vmatpush1.msra.mxu0 %v1784
  %1786 = vmatprep.subr.mxu0 0.0
  %v1787 = vand.u32 %v1507, 4294901760
  %v1788 = vsub.f32 %v1507, %v1787
  %1789 = vmatpush1.msra.mxu0 %v1788
  %1790 = vmatprep.subr.mxu0 0.0
  %v1791 = vand.u32 %v1505, 4294901760
  %v1792 = vsub.f32 %v1505, %v1791
  %1793 = vmatpush1.msra.mxu0 %v1792
  %1794 = vmatprep.subr.mxu0 0.0
  %v1795 = vand.u32 %v1503, 4294901760
  %v1796 = vsub.f32 %v1503, %v1795
  %1797 = vmatpush1.msra.mxu0 %v1796
  %1798 = vmatprep.subr.mxu0 0.0
  %v1799 = vand.u32 %v1501, 4294901760
  %v1800 = vsub.f32 %v1501, %v1799
  %1801 = vmatpush1.msra.mxu0 %v1800
  %1802 = vmatprep.subr.mxu0 0.0
  %v1803 = vand.u32 %v1499, 4294901760
  %v1804 = vsub.f32 %v1499, %v1803
  %1805 = vmatpush1.msra.mxu0 %v1804
  %1806 = vmatprep.subr.mxu0 0.0
  %v1807 = vand.u32 %v1497, 4294901760
  %v1808 = vsub.f32 %v1497, %v1807
  %1809 = vmatpush1.msra.mxu0 %v1808
  %1810 = vmatprep.subr.mxu0 0.0
  %v1811 = vand.u32 %v1495, 4294901760
  %v1812 = vsub.f32 %v1495, %v1811
  %1813 = vmatpush1.msra.mxu0 %v1812
  %1814 = vmatprep.subr.mxu0 0.0
  %v1815 = vand.u32 %v1493, 4294901760
  %v1816 = vsub.f32 %v1493, %v1815
  %1817 = vmatpush1.msra.mxu0 %v1816
  %1818 = vmatprep.subr.mxu0 0.0
  %v1819 = vand.u32 %v1491, 4294901760
  %v1820 = vsub.f32 %v1491, %v1819
  %1821 = vmatpush1.msra.mxu0 %v1820
  %1822 = vmatprep.subr.mxu0 0.0
  %v1823 = vand.u32 %v1489, 4294901760
  %v1824 = vsub.f32 %v1489, %v1823
  %1825 = vmatpush1.msra.mxu0 %v1824
  %1826 = vmatprep.subr.mxu0 0.0
  %1827 = vmatpush2.msra.mxu0 0.0
  %1828 = vmatprep.subr.mxu0 0.0
  %1829 = vmatpush2.msra.mxu0 0.0
  %1830 = vmatprep.subr.mxu0 0.0
  %1831 = vmatpush2.msra.mxu0 0.0
  %1832 = vmatprep.subr.mxu0 0.0
  %1833 = vmatpush2.msra.mxu0 0.0
  %1834 = vmatprep.subr.mxu0 0.0
  %1835 = vmatpush2.msra.mxu0 0.0
  %1836 = vmatprep.subr.mxu0 0.0
  %1837 = vmatpush2.msra.mxu0 0.0
  %1838 = vmatprep.subr.mxu0 0.0
  %1839 = vmatpush2.msra.mxu0 0.0
  %1840 = vmatprep.subr.mxu0 0.0
  %1841 = vmatpush2.msra.mxu0 0.0
  %1842 = vmatprep.subr.mxu0 0.0
  %1843 = vmatpush2.msra.mxu0 0.0
  %1844 = vmatprep.subr.mxu0 0.0
  %1845 = vmatpush2.msra.mxu0 0.0
  %1846 = vmatprep.subr.mxu0 0.0
  %1847 = vmatpush2.msra.mxu0 0.0
  %1848 = vmatprep.subr.mxu0 0.0
  %1849 = vmatpush2.msra.mxu0 0.0
  %1850 = vmatprep.subr.mxu0 0.0
  %1851 = vmatpush2.msra.mxu0 0.0
  %1852 = vmatprep.subr.mxu0 0.0
  %1853 = vmatpush2.msra.mxu0 0.0
  %1854 = vmatprep.subr.mxu0 0.0
  %1855 = vmatpush2.msra.mxu0 0.0
  %1856 = vmatprep.subr.mxu0 0.0
  %1857 = vmatpush2.msra.mxu0 0.0
  %1858 = vmatprep.mubr.f32.mxu0 0.0
  %v1859 = vand.u32 %v17, 4294901760
  %v1860 = vsub.f32 %v17, %v1859
  %1861 = vmatmul.mubr.f32.gmra.mxu0 %v1860
  %v1862 = vpop.f32.mrf.mxu0
  %v1863 = vadd.f32 %v1759, %v1862
  %v1864 = vpop.f32.mrf.mxu0
  %1865 = vdwg.mxu0
  %1866 = vmatprep.subr.mxu0 0.0
  %v1867 = vand.u32 %v1519, 4294901760
  %1868 = vmatpush1.msra.mxu0 %v1867
  %1869 = vmatprep.subr.mxu0 0.0
  %v1870 = vand.u32 %v1517, 4294901760
  %1871 = vmatpush1.msra.mxu0 %v1870
  %1872 = vmatprep.subr.mxu0 0.0
  %v1873 = vand.u32 %v1515, 4294901760
  %1874 = vmatpush1.msra.mxu0 %v1873
  %1875 = vmatprep.subr.mxu0 0.0
  %v1876 = vand.u32 %v1513, 4294901760
  %1877 = vmatpush1.msra.mxu0 %v1876
  %1878 = vmatprep.subr.mxu0 0.0
  %v1879 = vand.u32 %v1511, 4294901760
  %1880 = vmatpush1.msra.mxu0 %v1879
  %1881 = vmatprep.subr.mxu0 0.0
  %v1882 = vand.u32 %v1509, 4294901760
  %1883 = vmatpush1.msra.mxu0 %v1882
  %1884 = vmatprep.subr.mxu0 0.0
  %v1885 = vand.u32 %v1507, 4294901760
  %1886 = vmatpush1.msra.mxu0 %v1885
  %1887 = vmatprep.subr.mxu0 0.0
  %v1888 = vand.u32 %v1505, 4294901760
  %1889 = vmatpush1.msra.mxu0 %v1888
  %1890 = vmatprep.subr.mxu0 0.0
  %v1891 = vand.u32 %v1503, 4294901760
  %1892 = vmatpush1.msra.mxu0 %v1891
  %1893 = vmatprep.subr.mxu0 0.0
  %v1894 = vand.u32 %v1501, 4294901760
  %1895 = vmatpush1.msra.mxu0 %v1894
  %1896 = vmatprep.subr.mxu0 0.0
  %v1897 = vand.u32 %v1499, 4294901760
  %1898 = vmatpush1.msra.mxu0 %v1897
  %1899 = vmatprep.subr.mxu0 0.0
  %v1900 = vand.u32 %v1497, 4294901760
  %1901 = vmatpush1.msra.mxu0 %v1900
  %1902 = vmatprep.subr.mxu0 0.0
  %v1903 = vand.u32 %v1495, 4294901760
  %1904 = vmatpush1.msra.mxu0 %v1903
  %1905 = vmatprep.subr.mxu0 0.0
  %v1906 = vand.u32 %v1493, 4294901760
  %1907 = vmatpush1.msra.mxu0 %v1906
  %1908 = vmatprep.subr.mxu0 0.0
  %v1909 = vand.u32 %v1491, 4294901760
  %1910 = vmatpush1.msra.mxu0 %v1909
  %1911 = vmatprep.subr.mxu0 0.0
  %v1912 = vand.u32 %v1489, 4294901760
  %1913 = vmatpush1.msra.mxu0 %v1912
  %1914 = vmatprep.subr.mxu0 0.0
  %1915 = vmatpush2.msra.mxu0 0.0
  %1916 = vmatprep.subr.mxu0 0.0
  %1917 = vmatpush2.msra.mxu0 0.0
  %1918 = vmatprep.subr.mxu0 0.0
  %1919 = vmatpush2.msra.mxu0 0.0
  %1920 = vmatprep.subr.mxu0 0.0
  %1921 = vmatpush2.msra.mxu0 0.0
  %1922 = vmatprep.subr.mxu0 0.0
  %1923 = vmatpush2.msra.mxu0 0.0
  %1924 = vmatprep.subr.mxu0 0.0
  %1925 = vmatpush2.msra.mxu0 0.0
  %1926 = vmatprep.subr.mxu0 0.0
  %1927 = vmatpush2.msra.mxu0 0.0
  %1928 = vmatprep.subr.mxu0 0.0
  %1929 = vmatpush2.msra.mxu0 0.0
  %1930 = vmatprep.subr.mxu0 0.0
  %1931 = vmatpush2.msra.mxu0 0.0
  %1932 = vmatprep.subr.mxu0 0.0
  %1933 = vmatpush2.msra.mxu0 0.0
  %1934 = vmatprep.subr.mxu0 0.0
  %1935 = vmatpush2.msra.mxu0 0.0
  %1936 = vmatprep.subr.mxu0 0.0
  %1937 = vmatpush2.msra.mxu0 0.0
  %1938 = vmatprep.subr.mxu0 0.0
  %1939 = vmatpush2.msra.mxu0 0.0
  %1940 = vmatprep.subr.mxu0 0.0
  %1941 = vmatpush2.msra.mxu0 0.0
  %1942 = vmatprep.subr.mxu0 0.0
  %1943 = vmatpush2.msra.mxu0 0.0
  %1944 = vmatprep.subr.mxu0 0.0
  %1945 = vmatpush2.msra.mxu0 0.0
  %1946 = vmatprep.mubr.f32.mxu0 0.0
  %v1947 = vand.u32 %v17, 4294901760
  %v1948 = vsub.f32 %v17, %v1947
  %v1949 = vand.u32 %v1948, 4294901760
  %1950 = vmatmul.mubr.f32.gmra.mxu0 %v1949
  %v1951 = vpop.f32.mrf.mxu0
  %v1952 = vadd.f32 %v1863, %v1951
  %v1953 = vpop.f32.mrf.mxu0
  %1954 = vdwg.mxu0
  %1955 = vmatprep.subr.mxu0 0.0
  %v1956 = vand.u32 %v1519, 4294901760
  %v1957 = vsub.f32 %v1519, %v1956
  %v1958 = vand.u32 %v1957, 4294901760
  %1959 = vmatpush1.msra.mxu0 %v1958
  %1960 = vmatprep.subr.mxu0 0.0
  %v1961 = vand.u32 %v1517, 4294901760
  %v1962 = vsub.f32 %v1517, %v1961
  %v1963 = vand.u32 %v1962, 4294901760
  %1964 = vmatpush1.msra.mxu0 %v1963
  %1965 = vmatprep.subr.mxu0 0.0
  %v1966 = vand.u32 %v1515, 4294901760
  %v1967 = vsub.f32 %v1515, %v1966
  %v1968 = vand.u32 %v1967, 4294901760
  %1969 = vmatpush1.msra.mxu0 %v1968
  %1970 = vmatprep.subr.mxu0 0.0
  %v1971 = vand.u32 %v1513, 4294901760
  %v1972 = vsub.f32 %v1513, %v1971
  %v1973 = vand.u32 %v1972, 4294901760
  %1974 = vmatpush1.msra.mxu0 %v1973
  %1975 = vmatprep.subr.mxu0 0.0
  %v1976 = vand.u32 %v1511, 4294901760
  %v1977 = vsub.f32 %v1511, %v1976
  %v1978 = vand.u32 %v1977, 4294901760
  %1979 = vmatpush1.msra.mxu0 %v1978
  %1980 = vmatprep.subr.mxu0 0.0
  %v1981 = vand.u32 %v1509, 4294901760
  %v1982 = vsub.f32 %v1509, %v1981
  %v1983 = vand.u32 %v1982, 4294901760
  %1984 = vmatpush1.msra.mxu0 %v1983
  %1985 = vmatprep.subr.mxu0 0.0
  %v1986 = vand.u32 %v1507, 4294901760
  %v1987 = vsub.f32 %v1507, %v1986
  %v1988 = vand.u32 %v1987, 4294901760
  %1989 = vmatpush1.msra.mxu0 %v1988
  %1990 = vmatprep.subr.mxu0 0.0
  %v1991 = vand.u32 %v1505, 4294901760
  %v1992 = vsub.f32 %v1505, %v1991
  %v1993 = vand.u32 %v1992, 4294901760
  %1994 = vmatpush1.msra.mxu0 %v1993
  %1995 = vmatprep.subr.mxu0 0.0
  %v1996 = vand.u32 %v1503, 4294901760
  %v1997 = vsub.f32 %v1503, %v1996
  %v1998 = vand.u32 %v1997, 4294901760
  %1999 = vmatpush1.msra.mxu0 %v1998
  %2000 = vmatprep.subr.mxu0 0.0
  %v2001 = vand.u32 %v1501, 4294901760
  %v2002 = vsub.f32 %v1501, %v2001
  %v2003 = vand.u32 %v2002, 4294901760
  %2004 = vmatpush1.msra.mxu0 %v2003
  %2005 = vmatprep.subr.mxu0 0.0
  %v2006 = vand.u32 %v1499, 4294901760
  %v2007 = vsub.f32 %v1499, %v2006
  %v2008 = vand.u32 %v2007, 4294901760
  %2009 = vmatpush1.msra.mxu0 %v2008
  %2010 = vmatprep.subr.mxu0 0.0
  %v2011 = vand.u32 %v1497, 4294901760
  %v2012 = vsub.f32 %v1497, %v2011
  %v2013 = vand.u32 %v2012, 4294901760
  %2014 = vmatpush1.msra.mxu0 %v2013
  %2015 = vmatprep.subr.mxu0 0.0
  %v2016 = vand.u32 %v1495, 4294901760
  %v2017 = vsub.f32 %v1495, %v2016
  %v2018 = vand.u32 %v2017, 4294901760
  %2019 = vmatpush1.msra.mxu0 %v2018
  %2020 = vmatprep.subr.mxu0 0.0
  %v2021 = vand.u32 %v1493, 4294901760
  %v2022 = vsub.f32 %v1493, %v2021
  %v2023 = vand.u32 %v2022, 4294901760
  %2024 = vmatpush1.msra.mxu0 %v2023
  %2025 = vmatprep.subr.mxu0 0.0
  %v2026 = vand.u32 %v1491, 4294901760
  %v2027 = vsub.f32 %v1491, %v2026
  %v2028 = vand.u32 %v2027, 4294901760
  %2029 = vmatpush1.msra.mxu0 %v2028
  %2030 = vmatprep.subr.mxu0 0.0
  %v2031 = vand.u32 %v1489, 4294901760
  %v2032 = vsub.f32 %v1489, %v2031
  %v2033 = vand.u32 %v2032, 4294901760
  %2034 = vmatpush1.msra.mxu0 %v2033
  %2035 = vmatprep.subr.mxu0 0.0
  %2036 = vmatpush2.msra.mxu0 0.0
  %2037 = vmatprep.subr.mxu0 0.0
  %2038 = vmatpush2.msra.mxu0 0.0
  %2039 = vmatprep.subr.mxu0 0.0
  %2040 = vmatpush2.msra.mxu0 0.0
  %2041 = vmatprep.subr.mxu0 0.0
  %2042 = vmatpush2.msra.mxu0 0.0
  %2043 = vmatprep.subr.mxu0 0.0
  %2044 = vmatpush2.msra.mxu0 0.0
  %2045 = vmatprep.subr.mxu0 0.0
  %2046 = vmatpush2.msra.mxu0 0.0
  %2047 = vmatprep.subr.mxu0 0.0
  %2048 = vmatpush2.msra.mxu0 0.0
  %2049 = vmatprep.subr.mxu0 0.0
  %2050 = vmatpush2.msra.mxu0 0.0
  %2051 = vmatprep.subr.mxu0 0.0
  %2052 = vmatpush2.msra.mxu0 0.0
  %2053 = vmatprep.subr.mxu0 0.0
  %2054 = vmatpush2.msra.mxu0 0.0
  %2055 = vmatprep.subr.mxu0 0.0
  %2056 = vmatpush2.msra.mxu0 0.0
  %2057 = vmatprep.subr.mxu0 0.0
  %2058 = vmatpush2.msra.mxu0 0.0
  %2059 = vmatprep.subr.mxu0 0.0
  %2060 = vmatpush2.msra.mxu0 0.0
  %2061 = vmatprep.subr.mxu0 0.0
  %2062 = vmatpush2.msra.mxu0 0.0
  %2063 = vmatprep.subr.mxu0 0.0
  %2064 = vmatpush2.msra.mxu0 0.0
  %2065 = vmatprep.subr.mxu0 0.0
  %2066 = vmatpush2.msra.mxu0 0.0
  %2067 = vmatprep.mubr.f32.mxu0 0.0
  %v2068 = vand.u32 %v17, 4294901760
  %2069 = vmatmul.mubr.f32.gmra.mxu0 %v2068
  %v2070 = vpop.f32.mrf.mxu0
  %v2071 = vadd.f32 %v1952, %v2070
  %v2072 = vpop.f32.mrf.mxu0
  %2073 = vdwg.mxu0
  %2074 = vmatprep.subr.mxu0 0.0
  %v2075 = vand.u32 %v1519, 4294901760
  %2076 = vmatpush1.msra.mxu0 %v2075
  %2077 = vmatprep.subr.mxu0 0.0
  %v2078 = vand.u32 %v1517, 4294901760
  %2079 = vmatpush1.msra.mxu0 %v2078
  %2080 = vmatprep.subr.mxu0 0.0
  %v2081 = vand.u32 %v1515, 4294901760
  %2082 = vmatpush1.msra.mxu0 %v2081
  %2083 = vmatprep.subr.mxu0 0.0
  %v2084 = vand.u32 %v1513, 4294901760
  %2085 = vmatpush1.msra.mxu0 %v2084
  %2086 = vmatprep.subr.mxu0 0.0
  %v2087 = vand.u32 %v1511, 4294901760
  %2088 = vmatpush1.msra.mxu0 %v2087
  %2089 = vmatprep.subr.mxu0 0.0
  %v2090 = vand.u32 %v1509, 4294901760
  %2091 = vmatpush1.msra.mxu0 %v2090
  %2092 = vmatprep.subr.mxu0 0.0
  %v2093 = vand.u32 %v1507, 4294901760
  %2094 = vmatpush1.msra.mxu0 %v2093
  %2095 = vmatprep.subr.mxu0 0.0
  %v2096 = vand.u32 %v1505, 4294901760
  %2097 = vmatpush1.msra.mxu0 %v2096
  %2098 = vmatprep.subr.mxu0 0.0
  %v2099 = vand.u32 %v1503, 4294901760
  %2100 = vmatpush1.msra.mxu0 %v2099
  %2101 = vmatprep.subr.mxu0 0.0
  %v2102 = vand.u32 %v1501, 4294901760
  %2103 = vmatpush1.msra.mxu0 %v2102
  %2104 = vmatprep.subr.mxu0 0.0
  %v2105 = vand.u32 %v1499, 4294901760
  %2106 = vmatpush1.msra.mxu0 %v2105
  %2107 = vmatprep.subr.mxu0 0.0
  %v2108 = vand.u32 %v1497, 4294901760
  %2109 = vmatpush1.msra.mxu0 %v2108
  %2110 = vmatprep.subr.mxu0 0.0
  %v2111 = vand.u32 %v1495, 4294901760
  %2112 = vmatpush1.msra.mxu0 %v2111
  %2113 = vmatprep.subr.mxu0 0.0
  %v2114 = vand.u32 %v1493, 4294901760
  %2115 = vmatpush1.msra.mxu0 %v2114
  %2116 = vmatprep.subr.mxu0 0.0
  %v2117 = vand.u32 %v1491, 4294901760
  %2118 = vmatpush1.msra.mxu0 %v2117
  %2119 = vmatprep.subr.mxu0 0.0
  %v2120 = vand.u32 %v1489, 4294901760
  %2121 = vmatpush1.msra.mxu0 %v2120
  %2122 = vmatprep.subr.mxu0 0.0
  %2123 = vmatpush2.msra.mxu0 0.0
  %2124 = vmatprep.subr.mxu0 0.0
  %2125 = vmatpush2.msra.mxu0 0.0
  %2126 = vmatprep.subr.mxu0 0.0
  %2127 = vmatpush2.msra.mxu0 0.0
  %2128 = vmatprep.subr.mxu0 0.0
  %2129 = vmatpush2.msra.mxu0 0.0
  %2130 = vmatprep.subr.mxu0 0.0
  %2131 = vmatpush2.msra.mxu0 0.0
  %2132 = vmatprep.subr.mxu0 0.0
  %2133 = vmatpush2.msra.mxu0 0.0
  %2134 = vmatprep.subr.mxu0 0.0
  %2135 = vmatpush2.msra.mxu0 0.0
  %2136 = vmatprep.subr.mxu0 0.0
  %2137 = vmatpush2.msra.mxu0 0.0
  %2138 = vmatprep.subr.mxu0 0.0
  %2139 = vmatpush2.msra.mxu0 0.0
  %2140 = vmatprep.subr.mxu0 0.0
  %2141 = vmatpush2.msra.mxu0 0.0
  %2142 = vmatprep.subr.mxu0 0.0
  %2143 = vmatpush2.msra.mxu0 0.0
  %2144 = vmatprep.subr.mxu0 0.0
  %2145 = vmatpush2.msra.mxu0 0.0
  %2146 = vmatprep.subr.mxu0 0.0
  %2147 = vmatpush2.msra.mxu0 0.0
  %2148 = vmatprep.subr.mxu0 0.0
  %2149 = vmatpush2.msra.mxu0 0.0
  %2150 = vmatprep.subr.mxu0 0.0
  %2151 = vmatpush2.msra.mxu0 0.0
  %2152 = vmatprep.subr.mxu0 0.0
  %2153 = vmatpush2.msra.mxu0 0.0
  %2154 = vmatprep.mubr.f32.mxu0 0.0
  %v2155 = vand.u32 %v17, 4294901760
  %2156 = vmatmul.mubr.f32.gmra.mxu0 %v2155
  %v2157 = vpop.f32.mrf.mxu0
  %v2158 = vadd.f32 %v2071, %v2157
  %v2159 = vpop.f32.mrf.mxu0
  %2160 = vdwg.mxu0
  %2161 = vmatprep.subr.mxu0 0.0
  %v2162 = vand.u32 %v33, 4294901760
  %2163 = vmatpush1.msra.mxu0 %v2162
  %2164 = vmatprep.subr.mxu0 0.0
  %v2165 = vand.u32 %v32, 4294901760
  %2166 = vmatpush1.msra.mxu0 %v2165
  %2167 = vmatprep.subr.mxu0 0.0
  %v2168 = vand.u32 %v31, 4294901760
  %2169 = vmatpush1.msra.mxu0 %v2168
  %2170 = vmatprep.subr.mxu0 0.0
  %v2171 = vand.u32 %v30, 4294901760
  %2172 = vmatpush1.msra.mxu0 %v2171
  %2173 = vmatprep.subr.mxu0 0.0
  %v2174 = vand.u32 %v29, 4294901760
  %2175 = vmatpush1.msra.mxu0 %v2174
  %2176 = vmatprep.subr.mxu0 0.0
  %v2177 = vand.u32 %v28, 4294901760
  %2178 = vmatpush1.msra.mxu0 %v2177
  %2179 = vmatprep.subr.mxu0 0.0
  %v2180 = vand.u32 %v27, 4294901760
  %2181 = vmatpush1.msra.mxu0 %v2180
  %2182 = vmatprep.subr.mxu0 0.0
  %v2183 = vand.u32 %v26, 4294901760
  %2184 = vmatpush1.msra.mxu0 %v2183
  %2185 = vmatprep.subr.mxu0 0.0
  %v2186 = vand.u32 %v25, 4294901760
  %2187 = vmatpush1.msra.mxu0 %v2186
  %2188 = vmatprep.subr.mxu0 0.0
  %v2189 = vand.u32 %v24, 4294901760
  %2190 = vmatpush1.msra.mxu0 %v2189
  %2191 = vmatprep.subr.mxu0 0.0
  %v2192 = vand.u32 %v23, 4294901760
  %2193 = vmatpush1.msra.mxu0 %v2192
  %2194 = vmatprep.subr.mxu0 0.0
  %v2195 = vand.u32 %v22, 4294901760
  %2196 = vmatpush1.msra.mxu0 %v2195
  %2197 = vmatprep.subr.mxu0 0.0
  %v2198 = vand.u32 %v21, 4294901760
  %2199 = vmatpush1.msra.mxu0 %v2198
  %2200 = vmatprep.subr.mxu0 0.0
  %v2201 = vand.u32 %v20, 4294901760
  %2202 = vmatpush1.msra.mxu0 %v2201
  %2203 = vmatprep.subr.mxu0 0.0
  %v2204 = vand.u32 %v19, 4294901760
  %2205 = vmatpush1.msra.mxu0 %v2204
  %2206 = vmatprep.subr.mxu0 0.0
  %v2207 = vand.u32 %v18, 4294901760
  %2208 = vmatpush1.msra.mxu0 %v2207
  %2209 = vmatprep.subr.mxu0 0.0
  %2210 = vmatpush2.msra.mxu0 0.0
  %2211 = vmatprep.subr.mxu0 0.0
  %2212 = vmatpush2.msra.mxu0 0.0
  %2213 = vmatprep.subr.mxu0 0.0
  %2214 = vmatpush2.msra.mxu0 0.0
  %2215 = vmatprep.subr.mxu0 0.0
  %2216 = vmatpush2.msra.mxu0 0.0
  %2217 = vmatprep.subr.mxu0 0.0
  %2218 = vmatpush2.msra.mxu0 0.0
  %2219 = vmatprep.subr.mxu0 0.0
  %2220 = vmatpush2.msra.mxu0 0.0
  %2221 = vmatprep.subr.mxu0 0.0
  %2222 = vmatpush2.msra.mxu0 0.0
  %2223 = vmatprep.subr.mxu0 0.0
  %2224 = vmatpush2.msra.mxu0 0.0
  %2225 = vmatprep.subr.mxu0 0.0
  %2226 = vmatpush2.msra.mxu0 0.0
  %2227 = vmatprep.subr.mxu0 0.0
  %2228 = vmatpush2.msra.mxu0 0.0
  %2229 = vmatprep.subr.mxu0 0.0
  %2230 = vmatpush2.msra.mxu0 0.0
  %2231 = vmatprep.subr.mxu0 0.0
  %2232 = vmatpush2.msra.mxu0 0.0
  %2233 = vmatprep.subr.mxu0 0.0
  %2234 = vmatpush2.msra.mxu0 0.0
  %2235 = vmatprep.subr.mxu0 0.0
  %2236 = vmatpush2.msra.mxu0 0.0
  %2237 = vmatprep.subr.mxu0 0.0
  %2238 = vmatpush2.msra.mxu0 0.0
  %2239 = vmatprep.subr.mxu0 0.0
  %2240 = vmatpush2.msra.mxu0 0.0
  %2241 = vmatprep.mubr.f32.mxu0 0.0
  %v2242 = vand.u32 %v2158, 4294901760
  %v2243 = vsub.f32 %v2158, %v2242
  %v2244 = vand.u32 %v2243, 4294901760
  %v2245 = vsub.f32 %v2243, %v2244
  %v2246 = vand.u32 %v2245, 4294901760
  %2247 = vmatmul.mubr.f32.gmra.mxu0 %v2246
  %v2248 = vpop.f32.mrf.mxu0
  %v2249 = vadd.f32 0.0, %v2248
  %v2250 = vpop.f32.mrf.mxu0
  %2251 = vdwg.mxu0
  %2252 = vmatprep.subr.mxu0 0.0
  %v2253 = vand.u32 %v33, 4294901760
  %v2254 = vsub.f32 %v33, %v2253
  %v2255 = vand.u32 %v2254, 4294901760
  %v2256 = vsub.f32 %v2254, %v2255
  %v2257 = vand.u32 %v2256, 4294901760
  %2258 = vmatpush1.msra.mxu0 %v2257
  %2259 = vmatprep.subr.mxu0 0.0
  %v2260 = vand.u32 %v32, 4294901760
  %v2261 = vsub.f32 %v32, %v2260
  %v2262 = vand.u32 %v2261, 4294901760
  %v2263 = vsub.f32 %v2261, %v2262
  %v2264 = vand.u32 %v2263, 4294901760
  %2265 = vmatpush1.msra.mxu0 %v2264
  %2266 = vmatprep.subr.mxu0 0.0
  %v2267 = vand.u32 %v31, 4294901760
  %v2268 = vsub.f32 %v31, %v2267
  %v2269 = vand.u32 %v2268, 4294901760
  %v2270 = vsub.f32 %v2268, %v2269
  %v2271 = vand.u32 %v2270, 4294901760
  %2272 = vmatpush1.msra.mxu0 %v2271
  %2273 = vmatprep.subr.mxu0 0.0
  %v2274 = vand.u32 %v30, 4294901760
  %v2275 = vsub.f32 %v30, %v2274
  %v2276 = vand.u32 %v2275, 4294901760
  %v2277 = vsub.f32 %v2275, %v2276
  %v2278 = vand.u32 %v2277, 4294901760
  %2279 = vmatpush1.msra.mxu0 %v2278
  %2280 = vmatprep.subr.mxu0 0.0
  %v2281 = vand.u32 %v29, 4294901760
  %v2282 = vsub.f32 %v29, %v2281
  %v2283 = vand.u32 %v2282, 4294901760
  %v2284 = vsub.f32 %v2282, %v2283
  %v2285 = vand.u32 %v2284, 4294901760
  %2286 = vmatpush1.msra.mxu0 %v2285
  %2287 = vmatprep.subr.mxu0 0.0
  %v2288 = vand.u32 %v28, 4294901760
  %v2289 = vsub.f32 %v28, %v2288
  %v2290 = vand.u32 %v2289, 4294901760
  %v2291 = vsub.f32 %v2289, %v2290
  %v2292 = vand.u32 %v2291, 4294901760
  %2293 = vmatpush1.msra.mxu0 %v2292
  %2294 = vmatprep.subr.mxu0 0.0
  %v2295 = vand.u32 %v27, 4294901760
  %v2296 = vsub.f32 %v27, %v2295
  %v2297 = vand.u32 %v2296, 4294901760
  %v2298 = vsub.f32 %v2296, %v2297
  %v2299 = vand.u32 %v2298, 4294901760
  %2300 = vmatpush1.msra.mxu0 %v2299
  %2301 = vmatprep.subr.mxu0 0.0
  %v2302 = vand.u32 %v26, 4294901760
  %v2303 = vsub.f32 %v26, %v2302
  %v2304 = vand.u32 %v2303, 4294901760
  %v2305 = vsub.f32 %v2303, %v2304
  %v2306 = vand.u32 %v2305, 4294901760
  %2307 = vmatpush1.msra.mxu0 %v2306
  %2308 = vmatprep.subr.mxu0 0.0
  %v2309 = vand.u32 %v25, 4294901760
  %v2310 = vsub.f32 %v25, %v2309
  %v2311 = vand.u32 %v2310, 4294901760
  %v2312 = vsub.f32 %v2310, %v2311
  %v2313 = vand.u32 %v2312, 4294901760
  %2314 = vmatpush1.msra.mxu0 %v2313
  %2315 = vmatprep.subr.mxu0 0.0
  %v2316 = vand.u32 %v24, 4294901760
  %v2317 = vsub.f32 %v24, %v2316
  %v2318 = vand.u32 %v2317, 4294901760
  %v2319 = vsub.f32 %v2317, %v2318
  %v2320 = vand.u32 %v2319, 4294901760
  %2321 = vmatpush1.msra.mxu0 %v2320
  %2322 = vmatprep.subr.mxu0 0.0
  %v2323 = vand.u32 %v23, 4294901760
  %v2324 = vsub.f32 %v23, %v2323
  %v2325 = vand.u32 %v2324, 4294901760
  %v2326 = vsub.f32 %v2324, %v2325
  %v2327 = vand.u32 %v2326, 4294901760
  %2328 = vmatpush1.msra.mxu0 %v2327
  %2329 = vmatprep.subr.mxu0 0.0
  %v2330 = vand.u32 %v22, 4294901760
  %v2331 = vsub.f32 %v22, %v2330
  %v2332 = vand.u32 %v2331, 4294901760
  %v2333 = vsub.f32 %v2331, %v2332
  %v2334 = vand.u32 %v2333, 4294901760
  %2335 = vmatpush1.msra.mxu0 %v2334
  %2336 = vmatprep.subr.mxu0 0.0
  %v2337 = vand.u32 %v21, 4294901760
  %v2338 = vsub.f32 %v21, %v2337
  %v2339 = vand.u32 %v2338, 4294901760
  %v2340 = vsub.f32 %v2338, %v2339
  %v2341 = vand.u32 %v2340, 4294901760
  %2342 = vmatpush1.msra.mxu0 %v2341
  %2343 = vmatprep.subr.mxu0 0.0
  %v2344 = vand.u32 %v20, 4294901760
  %v2345 = vsub.f32 %v20, %v2344
  %v2346 = vand.u32 %v2345, 4294901760
  %v2347 = vsub.f32 %v2345, %v2346
  %v2348 = vand.u32 %v2347, 4294901760
  %2349 = vmatpush1.msra.mxu0 %v2348
  %2350 = vmatprep.subr.mxu0 0.0
  %v2351 = vand.u32 %v19, 4294901760
  %v2352 = vsub.f32 %v19, %v2351
  %v2353 = vand.u32 %v2352, 4294901760
  %v2354 = vsub.f32 %v2352, %v2353
  %v2355 = vand.u32 %v2354, 4294901760
  %2356 = vmatpush1.msra.mxu0 %v2355
  %2357 = vmatprep.subr.mxu0 0.0
  %v2358 = vand.u32 %v18, 4294901760
  %v2359 = vsub.f32 %v18, %v2358
  %v2360 = vand.u32 %v2359, 4294901760
  %v2361 = vsub.f32 %v2359, %v2360
  %v2362 = vand.u32 %v2361, 4294901760
  %2363 = vmatpush1.msra.mxu0 %v2362
  %2364 = vmatprep.subr.mxu0 0.0
  %2365 = vmatpush2.msra.mxu0 0.0
  %2366 = vmatprep.subr.mxu0 0.0
  %2367 = vmatpush2.msra.mxu0 0.0
  %2368 = vmatprep.subr.mxu0 0.0
  %2369 = vmatpush2.msra.mxu0 0.0
  %2370 = vmatprep.subr.mxu0 0.0
  %2371 = vmatpush2.msra.mxu0 0.0
  %2372 = vmatprep.subr.mxu0 0.0
  %2373 = vmatpush2.msra.mxu0 0.0
  %2374 = vmatprep.subr.mxu0 0.0
  %2375 = vmatpush2.msra.mxu0 0.0
  %2376 = vmatprep.subr.mxu0 0.0
  %2377 = vmatpush2.msra.mxu0 0.0
  %2378 = vmatprep.subr.mxu0 0.0
  %2379 = vmatpush2.msra.mxu0 0.0
  %2380 = vmatprep.subr.mxu0 0.0
  %2381 = vmatpush2.msra.mxu0 0.0
  %2382 = vmatprep.subr.mxu0 0.0
  %2383 = vmatpush2.msra.mxu0 0.0
  %2384 = vmatprep.subr.mxu0 0.0
  %2385 = vmatpush2.msra.mxu0 0.0
  %2386 = vmatprep.subr.mxu0 0.0
  %2387 = vmatpush2.msra.mxu0 0.0
  %2388 = vmatprep.subr.mxu0 0.0
  %2389 = vmatpush2.msra.mxu0 0.0
  %2390 = vmatprep.subr.mxu0 0.0
  %2391 = vmatpush2.msra.mxu0 0.0
  %2392 = vmatprep.subr.mxu0 0.0
  %2393 = vmatpush2.msra.mxu0 0.0
  %2394 = vmatprep.subr.mxu0 0.0
  %2395 = vmatpush2.msra.mxu0 0.0
  %2396 = vmatprep.mubr.f32.mxu0 0.0
  %v2397 = vand.u32 %v2158, 4294901760
  %2398 = vmatmul.mubr.f32.gmra.mxu0 %v2397
  %v2399 = vpop.f32.mrf.mxu0
  %v2400 = vadd.f32 %v2249, %v2399
  %v2401 = vpop.f32.mrf.mxu0
  %2402 = vdwg.mxu0
  %2403 = vmatprep.subr.mxu0 0.0
  %v2404 = vand.u32 %v33, 4294901760
  %v2405 = vsub.f32 %v33, %v2404
  %2406 = vmatpush1.msra.mxu0 %v2405
  %2407 = vmatprep.subr.mxu0 0.0
  %v2408 = vand.u32 %v32, 4294901760
  %v2409 = vsub.f32 %v32, %v2408
  %2410 = vmatpush1.msra.mxu0 %v2409
  %2411 = vmatprep.subr.mxu0 0.0
  %v2412 = vand.u32 %v31, 4294901760
  %v2413 = vsub.f32 %v31, %v2412
  %2414 = vmatpush1.msra.mxu0 %v2413
  %2415 = vmatprep.subr.mxu0 0.0
  %v2416 = vand.u32 %v30, 4294901760
  %v2417 = vsub.f32 %v30, %v2416
  %2418 = vmatpush1.msra.mxu0 %v2417
  %2419 = vmatprep.subr.mxu0 0.0
  %v2420 = vand.u32 %v29, 4294901760
  %v2421 = vsub.f32 %v29, %v2420
  %2422 = vmatpush1.msra.mxu0 %v2421
  %2423 = vmatprep.subr.mxu0 0.0
  %v2424 = vand.u32 %v28, 4294901760
  %v2425 = vsub.f32 %v28, %v2424
  %2426 = vmatpush1.msra.mxu0 %v2425
  %2427 = vmatprep.subr.mxu0 0.0
  %v2428 = vand.u32 %v27, 4294901760
  %v2429 = vsub.f32 %v27, %v2428
  %2430 = vmatpush1.msra.mxu0 %v2429
  %2431 = vmatprep.subr.mxu0 0.0
  %v2432 = vand.u32 %v26, 4294901760
  %v2433 = vsub.f32 %v26, %v2432
  %2434 = vmatpush1.msra.mxu0 %v2433
  %2435 = vmatprep.subr.mxu0 0.0
  %v2436 = vand.u32 %v25, 4294901760
  %v2437 = vsub.f32 %v25, %v2436
  %2438 = vmatpush1.msra.mxu0 %v2437
  %2439 = vmatprep.subr.mxu0 0.0
  %v2440 = vand.u32 %v24, 4294901760
  %v2441 = vsub.f32 %v24, %v2440
  %2442 = vmatpush1.msra.mxu0 %v2441
  %2443 = vmatprep.subr.mxu0 0.0
  %v2444 = vand.u32 %v23, 4294901760
  %v2445 = vsub.f32 %v23, %v2444
  %2446 = vmatpush1.msra.mxu0 %v2445
  %2447 = vmatprep.subr.mxu0 0.0
  %v2448 = vand.u32 %v22, 4294901760
  %v2449 = vsub.f32 %v22, %v2448
  %2450 = vmatpush1.msra.mxu0 %v2449
  %2451 = vmatprep.subr.mxu0 0.0
  %v2452 = vand.u32 %v21, 4294901760
  %v2453 = vsub.f32 %v21, %v2452
  %2454 = vmatpush1.msra.mxu0 %v2453
  %2455 = vmatprep.subr.mxu0 0.0
  %v2456 = vand.u32 %v20, 4294901760
  %v2457 = vsub.f32 %v20, %v2456
  %2458 = vmatpush1.msra.mxu0 %v2457
  %2459 = vmatprep.subr.mxu0 0.0
  %v2460 = vand.u32 %v19, 4294901760
  %v2461 = vsub.f32 %v19, %v2460
  %2462 = vmatpush1.msra.mxu0 %v2461
  %2463 = vmatprep.subr.mxu0 0.0
  %v2464 = vand.u32 %v18, 4294901760
  %v2465 = vsub.f32 %v18, %v2464
  %2466 = vmatpush1.msra.mxu0 %v2465
  %2467 = vmatprep.subr.mxu0 0.0
  %2468 = vmatpush2.msra.mxu0 0.0
  %2469 = vmatprep.subr.mxu0 0.0
  %2470 = vmatpush2.msra.mxu0 0.0
  %2471 = vmatprep.subr.mxu0 0.0
  %2472 = vmatpush2.msra.mxu0 0.0
  %2473 = vmatprep.subr.mxu0 0.0
  %2474 = vmatpush2.msra.mxu0 0.0
  %2475 = vmatprep.subr.mxu0 0.0
  %2476 = vmatpush2.msra.mxu0 0.0
  %2477 = vmatprep.subr.mxu0 0.0
  %2478 = vmatpush2.msra.mxu0 0.0
  %2479 = vmatprep.subr.mxu0 0.0
  %2480 = vmatpush2.msra.mxu0 0.0
  %2481 = vmatprep.subr.mxu0 0.0
  %2482 = vmatpush2.msra.mxu0 0.0
  %2483 = vmatprep.subr.mxu0 0.0
  %2484 = vmatpush2.msra.mxu0 0.0
  %2485 = vmatprep.subr.mxu0 0.0
  %2486 = vmatpush2.msra.mxu0 0.0
  %2487 = vmatprep.subr.mxu0 0.0
  %2488 = vmatpush2.msra.mxu0 0.0
  %2489 = vmatprep.subr.mxu0 0.0
  %2490 = vmatpush2.msra.mxu0 0.0
  %2491 = vmatprep.subr.mxu0 0.0
  %2492 = vmatpush2.msra.mxu0 0.0
  %2493 = vmatprep.subr.mxu0 0.0
  %2494 = vmatpush2.msra.mxu0 0.0
  %2495 = vmatprep.subr.mxu0 0.0
  %2496 = vmatpush2.msra.mxu0 0.0
  %2497 = vmatprep.subr.mxu0 0.0
  %2498 = vmatpush2.msra.mxu0 0.0
  %2499 = vmatprep.mubr.f32.mxu0 0.0
  %v2500 = vand.u32 %v2158, 4294901760
  %v2501 = vsub.f32 %v2158, %v2500
  %2502 = vmatmul.mubr.f32.gmra.mxu0 %v2501
  %v2503 = vpop.f32.mrf.mxu0
  %v2504 = vadd.f32 %v2400, %v2503
  %v2505 = vpop.f32.mrf.mxu0
  %2506 = vdwg.mxu0
  %2507 = vmatprep.subr.mxu0 0.0
  %v2508 = vand.u32 %v33, 4294901760
  %2509 = vmatpush1.msra.mxu0 %v2508
  %2510 = vmatprep.subr.mxu0 0.0
  %v2511 = vand.u32 %v32, 4294901760
  %2512 = vmatpush1.msra.mxu0 %v2511
  %2513 = vmatprep.subr.mxu0 0.0
  %v2514 = vand.u32 %v31, 4294901760
  %2515 = vmatpush1.msra.mxu0 %v2514
  %2516 = vmatprep.subr.mxu0 0.0
  %v2517 = vand.u32 %v30, 4294901760
  %2518 = vmatpush1.msra.mxu0 %v2517
  %2519 = vmatprep.subr.mxu0 0.0
  %v2520 = vand.u32 %v29, 4294901760
  %2521 = vmatpush1.msra.mxu0 %v2520
  %2522 = vmatprep.subr.mxu0 0.0
  %v2523 = vand.u32 %v28, 4294901760
  %2524 = vmatpush1.msra.mxu0 %v2523
  %2525 = vmatprep.subr.mxu0 0.0
  %v2526 = vand.u32 %v27, 4294901760
  %2527 = vmatpush1.msra.mxu0 %v2526
  %2528 = vmatprep.subr.mxu0 0.0
  %v2529 = vand.u32 %v26, 4294901760
  %2530 = vmatpush1.msra.mxu0 %v2529
  %2531 = vmatprep.subr.mxu0 0.0
  %v2532 = vand.u32 %v25, 4294901760
  %2533 = vmatpush1.msra.mxu0 %v2532
  %2534 = vmatprep.subr.mxu0 0.0
  %v2535 = vand.u32 %v24, 4294901760
  %2536 = vmatpush1.msra.mxu0 %v2535
  %2537 = vmatprep.subr.mxu0 0.0
  %v2538 = vand.u32 %v23, 4294901760
  %2539 = vmatpush1.msra.mxu0 %v2538
  %2540 = vmatprep.subr.mxu0 0.0
  %v2541 = vand.u32 %v22, 4294901760
  %2542 = vmatpush1.msra.mxu0 %v2541
  %2543 = vmatprep.subr.mxu0 0.0
  %v2544 = vand.u32 %v21, 4294901760
  %2545 = vmatpush1.msra.mxu0 %v2544
  %2546 = vmatprep.subr.mxu0 0.0
  %v2547 = vand.u32 %v20, 4294901760
  %2548 = vmatpush1.msra.mxu0 %v2547
  %2549 = vmatprep.subr.mxu0 0.0
  %v2550 = vand.u32 %v19, 4294901760
  %2551 = vmatpush1.msra.mxu0 %v2550
  %2552 = vmatprep.subr.mxu0 0.0
  %v2553 = vand.u32 %v18, 4294901760
  %2554 = vmatpush1.msra.mxu0 %v2553
  %2555 = vmatprep.subr.mxu0 0.0
  %2556 = vmatpush2.msra.mxu0 0.0
  %2557 = vmatprep.subr.mxu0 0.0
  %2558 = vmatpush2.msra.mxu0 0.0
  %2559 = vmatprep.subr.mxu0 0.0
  %2560 = vmatpush2.msra.mxu0 0.0
  %2561 = vmatprep.subr.mxu0 0.0
  %2562 = vmatpush2.msra.mxu0 0.0
  %2563 = vmatprep.subr.mxu0 0.0
  %2564 = vmatpush2.msra.mxu0 0.0
  %2565 = vmatprep.subr.mxu0 0.0
  %2566 = vmatpush2.msra.mxu0 0.0
  %2567 = vmatprep.subr.mxu0 0.0
  %2568 = vmatpush2.msra.mxu0 0.0
  %2569 = vmatprep.subr.mxu0 0.0
  %2570 = vmatpush2.msra.mxu0 0.0
  %2571 = vmatprep.subr.mxu0 0.0
  %2572 = vmatpush2.msra.mxu0 0.0
  %2573 = vmatprep.subr.mxu0 0.0
  %2574 = vmatpush2.msra.mxu0 0.0
  %2575 = vmatprep.subr.mxu0 0.0
  %2576 = vmatpush2.msra.mxu0 0.0
  %2577 = vmatprep.subr.mxu0 0.0
  %2578 = vmatpush2.msra.mxu0 0.0
  %2579 = vmatprep.subr.mxu0 0.0
  %2580 = vmatpush2.msra.mxu0 0.0
  %2581 = vmatprep.subr.mxu0 0.0
  %2582 = vmatpush2.msra.mxu0 0.0
  %2583 = vmatprep.subr.mxu0 0.0
  %2584 = vmatpush2.msra.mxu0 0.0
  %2585 = vmatprep.subr.mxu0 0.0
  %2586 = vmatpush2.msra.mxu0 0.0
  %2587 = vmatprep.mubr.f32.mxu0 0.0
  %v2588 = vand.u32 %v2158, 4294901760
  %v2589 = vsub.f32 %v2158, %v2588
  %v2590 = vand.u32 %v2589, 4294901760
  %2591 = vmatmul.mubr.f32.gmra.mxu0 %v2590
  %v2592 = vpop.f32.mrf.mxu0
  %v2593 = vadd.f32 %v2504, %v2592
  %v2594 = vpop.f32.mrf.mxu0
  %2595 = vdwg.mxu0
  %2596 = vmatprep.subr.mxu0 0.0
  %v2597 = vand.u32 %v33, 4294901760
  %v2598 = vsub.f32 %v33, %v2597
  %v2599 = vand.u32 %v2598, 4294901760
  %2600 = vmatpush1.msra.mxu0 %v2599
  %2601 = vmatprep.subr.mxu0 0.0
  %v2602 = vand.u32 %v32, 4294901760
  %v2603 = vsub.f32 %v32, %v2602
  %v2604 = vand.u32 %v2603, 4294901760
  %2605 = vmatpush1.msra.mxu0 %v2604
  %2606 = vmatprep.subr.mxu0 0.0
  %v2607 = vand.u32 %v31, 4294901760
  %v2608 = vsub.f32 %v31, %v2607
  %v2609 = vand.u32 %v2608, 4294901760
  %2610 = vmatpush1.msra.mxu0 %v2609
  %2611 = vmatprep.subr.mxu0 0.0
  %v2612 = vand.u32 %v30, 4294901760
  %v2613 = vsub.f32 %v30, %v2612
  %v2614 = vand.u32 %v2613, 4294901760
  %2615 = vmatpush1.msra.mxu0 %v2614
  %2616 = vmatprep.subr.mxu0 0.0
  %v2617 = vand.u32 %v29, 4294901760
  %v2618 = vsub.f32 %v29, %v2617
  %v2619 = vand.u32 %v2618, 4294901760
  %2620 = vmatpush1.msra.mxu0 %v2619
  %2621 = vmatprep.subr.mxu0 0.0
  %v2622 = vand.u32 %v28, 4294901760
  %v2623 = vsub.f32 %v28, %v2622
  %v2624 = vand.u32 %v2623, 4294901760
  %2625 = vmatpush1.msra.mxu0 %v2624
  %2626 = vmatprep.subr.mxu0 0.0
  %v2627 = vand.u32 %v27, 4294901760
  %v2628 = vsub.f32 %v27, %v2627
  %v2629 = vand.u32 %v2628, 4294901760
  %2630 = vmatpush1.msra.mxu0 %v2629
  %2631 = vmatprep.subr.mxu0 0.0
  %v2632 = vand.u32 %v26, 4294901760
  %v2633 = vsub.f32 %v26, %v2632
  %v2634 = vand.u32 %v2633, 4294901760
  %2635 = vmatpush1.msra.mxu0 %v2634
  %2636 = vmatprep.subr.mxu0 0.0
  %v2637 = vand.u32 %v25, 4294901760
  %v2638 = vsub.f32 %v25, %v2637
  %v2639 = vand.u32 %v2638, 4294901760
  %2640 = vmatpush1.msra.mxu0 %v2639
  %2641 = vmatprep.subr.mxu0 0.0
  %v2642 = vand.u32 %v24, 4294901760
  %v2643 = vsub.f32 %v24, %v2642
  %v2644 = vand.u32 %v2643, 4294901760
  %2645 = vmatpush1.msra.mxu0 %v2644
  %2646 = vmatprep.subr.mxu0 0.0
  %v2647 = vand.u32 %v23, 4294901760
  %v2648 = vsub.f32 %v23, %v2647
  %v2649 = vand.u32 %v2648, 4294901760
  %2650 = vmatpush1.msra.mxu0 %v2649
  %2651 = vmatprep.subr.mxu0 0.0
  %v2652 = vand.u32 %v22, 4294901760
  %v2653 = vsub.f32 %v22, %v2652
  %v2654 = vand.u32 %v2653, 4294901760
  %2655 = vmatpush1.msra.mxu0 %v2654
  %2656 = vmatprep.subr.mxu0 0.0
  %v2657 = vand.u32 %v21, 4294901760
  %v2658 = vsub.f32 %v21, %v2657
  %v2659 = vand.u32 %v2658, 4294901760
  %2660 = vmatpush1.msra.mxu0 %v2659
  %2661 = vmatprep.subr.mxu0 0.0
  %v2662 = vand.u32 %v20, 4294901760
  %v2663 = vsub.f32 %v20, %v2662
  %v2664 = vand.u32 %v2663, 4294901760
  %2665 = vmatpush1.msra.mxu0 %v2664
  %2666 = vmatprep.subr.mxu0 0.0
  %v2667 = vand.u32 %v19, 4294901760
  %v2668 = vsub.f32 %v19, %v2667
  %v2669 = vand.u32 %v2668, 4294901760
  %2670 = vmatpush1.msra.mxu0 %v2669
  %2671 = vmatprep.subr.mxu0 0.0
  %v2672 = vand.u32 %v18, 4294901760
  %v2673 = vsub.f32 %v18, %v2672
  %v2674 = vand.u32 %v2673, 4294901760
  %2675 = vmatpush1.msra.mxu0 %v2674
  %2676 = vmatprep.subr.mxu0 0.0
  %2677 = vmatpush2.msra.mxu0 0.0
  %2678 = vmatprep.subr.mxu0 0.0
  %2679 = vmatpush2.msra.mxu0 0.0
  %2680 = vmatprep.subr.mxu0 0.0
  %2681 = vmatpush2.msra.mxu0 0.0
  %2682 = vmatprep.subr.mxu0 0.0
  %2683 = vmatpush2.msra.mxu0 0.0
  %2684 = vmatprep.subr.mxu0 0.0
  %2685 = vmatpush2.msra.mxu0 0.0
  %2686 = vmatprep.subr.mxu0 0.0
  %2687 = vmatpush2.msra.mxu0 0.0
  %2688 = vmatprep.subr.mxu0 0.0
  %2689 = vmatpush2.msra.mxu0 0.0
  %2690 = vmatprep.subr.mxu0 0.0
  %2691 = vmatpush2.msra.mxu0 0.0
  %2692 = vmatprep.subr.mxu0 0.0
  %2693 = vmatpush2.msra.mxu0 0.0
  %2694 = vmatprep.subr.mxu0 0.0
  %2695 = vmatpush2.msra.mxu0 0.0
  %2696 = vmatprep.subr.mxu0 0.0
  %2697 = vmatpush2.msra.mxu0 0.0
  %2698 = vmatprep.subr.mxu0 0.0
  %2699 = vmatpush2.msra.mxu0 0.0
  %2700 = vmatprep.subr.mxu0 0.0
  %2701 = vmatpush2.msra.mxu0 0.0
  %2702 = vmatprep.subr.mxu0 0.0
  %2703 = vmatpush2.msra.mxu0 0.0
  %2704 = vmatprep.subr.mxu0 0.0
  %2705 = vmatpush2.msra.mxu0 0.0
  %2706 = vmatprep.subr.mxu0 0.0
  %2707 = vmatpush2.msra.mxu0 0.0
  %2708 = vmatprep.mubr.f32.mxu0 0.0
  %v2709 = vand.u32 %v2158, 4294901760
  %2710 = vmatmul.mubr.f32.gmra.mxu0 %v2709
  %v2711 = vpop.f32.mrf.mxu0
  %v2712 = vadd.f32 %v2593, %v2711
  %v2713 = vpop.f32.mrf.mxu0
  %2714 = vdwg.mxu0
  %2715 = vmatprep.subr.mxu0 0.0
  %v2716 = vand.u32 %v33, 4294901760
  %2717 = vmatpush1.msra.mxu0 %v2716
  %2718 = vmatprep.subr.mxu0 0.0
  %v2719 = vand.u32 %v32, 4294901760
  %2720 = vmatpush1.msra.mxu0 %v2719
  %2721 = vmatprep.subr.mxu0 0.0
  %v2722 = vand.u32 %v31, 4294901760
  %2723 = vmatpush1.msra.mxu0 %v2722
  %2724 = vmatprep.subr.mxu0 0.0
  %v2725 = vand.u32 %v30, 4294901760
  %2726 = vmatpush1.msra.mxu0 %v2725
  %2727 = vmatprep.subr.mxu0 0.0
  %v2728 = vand.u32 %v29, 4294901760
  %2729 = vmatpush1.msra.mxu0 %v2728
  %2730 = vmatprep.subr.mxu0 0.0
  %v2731 = vand.u32 %v28, 4294901760
  %2732 = vmatpush1.msra.mxu0 %v2731
  %2733 = vmatprep.subr.mxu0 0.0
  %v2734 = vand.u32 %v27, 4294901760
  %2735 = vmatpush1.msra.mxu0 %v2734
  %2736 = vmatprep.subr.mxu0 0.0
  %v2737 = vand.u32 %v26, 4294901760
  %2738 = vmatpush1.msra.mxu0 %v2737
  %2739 = vmatprep.subr.mxu0 0.0
  %v2740 = vand.u32 %v25, 4294901760
  %2741 = vmatpush1.msra.mxu0 %v2740
  %2742 = vmatprep.subr.mxu0 0.0
  %v2743 = vand.u32 %v24, 4294901760
  %2744 = vmatpush1.msra.mxu0 %v2743
  %2745 = vmatprep.subr.mxu0 0.0
  %v2746 = vand.u32 %v23, 4294901760
  %2747 = vmatpush1.msra.mxu0 %v2746
  %2748 = vmatprep.subr.mxu0 0.0
  %v2749 = vand.u32 %v22, 4294901760
  %2750 = vmatpush1.msra.mxu0 %v2749
  %2751 = vmatprep.subr.mxu0 0.0
  %v2752 = vand.u32 %v21, 4294901760
  %2753 = vmatpush1.msra.mxu0 %v2752
  %2754 = vmatprep.subr.mxu0 0.0
  %v2755 = vand.u32 %v20, 4294901760
  %2756 = vmatpush1.msra.mxu0 %v2755
  %2757 = vmatprep.subr.mxu0 0.0
  %v2758 = vand.u32 %v19, 4294901760
  %2759 = vmatpush1.msra.mxu0 %v2758
  %2760 = vmatprep.subr.mxu0 0.0
  %v2761 = vand.u32 %v18, 4294901760
  %2762 = vmatpush1.msra.mxu0 %v2761
  %2763 = vmatprep.subr.mxu0 0.0
  %2764 = vmatpush2.msra.mxu0 0.0
  %2765 = vmatprep.subr.mxu0 0.0
  %2766 = vmatpush2.msra.mxu0 0.0
  %2767 = vmatprep.subr.mxu0 0.0
  %2768 = vmatpush2.msra.mxu0 0.0
  %2769 = vmatprep.subr.mxu0 0.0
  %2770 = vmatpush2.msra.mxu0 0.0
  %2771 = vmatprep.subr.mxu0 0.0
  %2772 = vmatpush2.msra.mxu0 0.0
  %2773 = vmatprep.subr.mxu0 0.0
  %2774 = vmatpush2.msra.mxu0 0.0
  %2775 = vmatprep.subr.mxu0 0.0
  %2776 = vmatpush2.msra.mxu0 0.0
  %2777 = vmatprep.subr.mxu0 0.0
  %2778 = vmatpush2.msra.mxu0 0.0
  %2779 = vmatprep.subr.mxu0 0.0
  %2780 = vmatpush2.msra.mxu0 0.0
  %2781 = vmatprep.subr.mxu0 0.0
  %2782 = vmatpush2.msra.mxu0 0.0
  %2783 = vmatprep.subr.mxu0 0.0
  %2784 = vmatpush2.msra.mxu0 0.0
  %2785 = vmatprep.subr.mxu0 0.0
  %2786 = vmatpush2.msra.mxu0 0.0
  %2787 = vmatprep.subr.mxu0 0.0
  %2788 = vmatpush2.msra.mxu0 0.0
  %2789 = vmatprep.subr.mxu0 0.0
  %2790 = vmatpush2.msra.mxu0 0.0
  %2791 = vmatprep.subr.mxu0 0.0
  %2792 = vmatpush2.msra.mxu0 0.0
  %2793 = vmatprep.subr.mxu0 0.0
  %2794 = vmatpush2.msra.mxu0 0.0
  %2795 = vmatprep.mubr.f32.mxu0 0.0
  %v2796 = vand.u32 %v2158, 4294901760
  %2797 = vmatmul.mubr.f32.gmra.mxu0 %v2796
  %v2798 = vpop.f32.mrf.mxu0
  %v2799 = vadd.f32 %v2712, %v2798
  %v2800 = vpop.f32.mrf.mxu0
  %2801 = vdwg.mxu0
  %v2803 = vrot.slane %v2799, 3
  %2804 = vrot.lane.b32.xlu0 %v2803, 125
  %v2805 = vpop.permute.xlu0 %2804
  %v2807 = vadd.f32 %v2799, %v2805
  %v2808 = vadd.f32 %v2807, %v1422
  %v2809 = vadd.f32 %v2807, %v1426
  %v2810 = vadd.f32 %v2807, %v1430
  %s2811 = scalar_lea.vmem %s4, 12
  %2812 = vst.msk [vmem:[%s2811] sm:$0x7] %vm1435, %v2808
  %2813 = vst.msk [vmem:[%s2811 + $0x4] sm:$0x7] %vm1435, %v2809
  %2814 = vst.msk [vmem:[%s2811 + $0x8] sm:$0x7] %vm1435, %v2810
  // Predicated region
  $region18: #{synthetic_conv2d_pallas.1} parent=0 // pred_check
    _
  $region19: #{synthetic_conv2d_pallas.1} parent=0 // pred_check_branch
    %2816 = sbr.rel (0) target = $region21
  $region20: #{synthetic_conv2d_pallas.1} parent=0 // pred_region
    _
  $region21: #{synthetic_conv2d_pallas.1} parent=0 // pred_fallthru
    _
  // Predicated region
  $region22: #{synthetic_conv2d_pallas.1} parent=0 // pred_check
    _
  $region23: #{synthetic_conv2d_pallas.1} parent=0 // pred_check_branch
    %2818 = sbr.rel (0) target = $region25
  $region24: #{synthetic_conv2d_pallas.1} parent=0 // pred_region
    _
  $region25: #{synthetic_conv2d_pallas.1} parent=0 // pred_fallthru
    _

</llo_original>
